<compile_context>
chip_gen: v7x
topology: tpu7x:2x2x1
jax: 0.10.0
libtpu: 0.0.40
codegen_flags: <defaults>
</compile_context>

<pallas_src>
import functools

import jax
import jax.numpy as jnp
from jax.experimental import pallas as pl
from jax.experimental.pallas import tpu as pltpu

EPS = 1e-5


# ------------------------------ kernel bodies --------------------------------
def _conv_stats(act2d, wband_ref, y_ref, stats_ref, pad_ref):
    """Banded 3x3 conv (stride 1, pad 1) + BN partial sums for one batch tile.

    act2d:   (NB*H, W*Cin) activation tile, already in the MXU operand dtype.
    wband:   (3, W*Cin, W*Cout) banded weights (one band per row tap dh).
    y_ref:   (NB*H, W*Cout) f32 raw conv output (pre-BN).
    stats:   (1, 2, W*Cout) f32 per-tile [sum, sum-of-squares] over rows.
    pad_ref: (NB, H+2, W*Cin) scratch in the operand dtype (2 halo rows only).
    """
    NB, Hp2, WCin = pad_ref.shape
    H = Hp2 - 2
    NBH = NB * H
    WCout = wband_ref.shape[-1]

    # Zero ONLY the two halo rows; the interior is fully overwritten below.
    # Done every step so a megacore-"parallel" grid needs no step-0 init.
    pad_ref[:, 0:1, :] = jnp.zeros((NB, 1, WCin), pad_ref.dtype)
    pad_ref[:, H + 1:H + 2, :] = jnp.zeros((NB, 1, WCin), pad_ref.dtype)
    pad_ref[:, 1:H + 1, :] = act2d.reshape(NB, H, WCin)

    # Three row-tap banded matmuls, f32 accumulation on the MXU.  The W-axis
    # zero padding is encoded in the band (omitted taps), so K = W*Cin exactly.
    acc = jnp.zeros((NBH, WCout), jnp.float32)
    for dh in range(3):
        lhs = pad_ref[:, dh:dh + H, :].reshape(NBH, WCin)
        acc += jnp.dot(lhs, wband_ref[dh], preferred_element_type=jnp.float32)
    y_ref[...] = acc

    # BN partial sums via MXU ones-row dots (keeps the XLU slot free).
    ones = jnp.ones((1, NBH), jnp.float32)
    s = jnp.dot(ones, acc, preferred_element_type=jnp.float32)
    q = jnp.dot(ones, acc * acc, preferred_element_type=jnp.float32)
    stats_ref[...] = jnp.concatenate([s, q], axis=0)[None]


def conv1_kernel(x_ref, wband_ref, y_ref, stats_ref, pad_ref, *, matmul_dtype):
    _conv_stats(x_ref[...].astype(matmul_dtype), wband_ref, y_ref, stats_ref,
                pad_ref)


def bn_relu_conv2_kernel(y1_ref, scale_ref, shift_ref, wband_ref,
                         y_ref, stats_ref, pad_ref, *, matmul_dtype):
    a = jnp.maximum(y1_ref[...] * scale_ref[...] + shift_ref[...], 0.0)
    _conv_stats(a.astype(matmul_dtype), wband_ref, y_ref, stats_ref, pad_ref)


def bn_add_relu_kernel(y2_ref, x_ref, scale_ref, shift_ref, out_ref):
    y = (y2_ref[...] * scale_ref[...] + shift_ref[...]
         + x_ref[...].astype(jnp.float32))
    out_ref[...] = jnp.maximum(y, 0.0).astype(out_ref.dtype)


# ------------------------------ wrapper helpers -------------------------------
def _make_band(w_hwio, W):
    """(3,3,Cin,Cout) HWIO -> (3, W*Cin, W*Cout) banded per-row-tap weights.

    band[dh, wi*Cin+ci, wo*Cout+co] = w[dh, wi-wo+1, ci, co] if |wi-wo|<=1 else 0
    Out-of-range taps are simply omitted, which encodes the W zero-padding.
    """
    _, _, Cin, Cout = w_hwio.shape
    wi = jnp.arange(W)[:, None]
    wo = jnp.arange(W)[None, :]
    dw = wi - wo + 1                                   # valid taps: 0..2
    valid = (dw >= 0) & (dw <= 2)
    blocks = w_hwio[:, jnp.clip(dw, 0, 2)]             # (3, W, W, Cin, Cout)
    blocks = jnp.where(valid[None, :, :, None, None], blocks, 0.0)
    return blocks.transpose(0, 1, 3, 2, 4).reshape(3, W * Cin, W * Cout)


def _fold_bn(stats, gamma, beta, count, W):
    """stats (n_tiles, 2, W*C) partial [sum, sumsq] -> lane-dense scale/shift."""
    C = gamma.shape[0]
    tot = stats.sum(axis=0)                            # (2, W*C)
    s = tot[0].reshape(W, C).sum(axis=0)
    q = tot[1].reshape(W, C).sum(axis=0)
    mean = s / count
    var = jnp.maximum(q / count - mean * mean, 0.0)    # clamp cancellation
    scale = gamma * jax.lax.rsqrt(var + EPS)
    shift = beta - mean * scale
    scale_row = jnp.tile(scale, W).reshape(1, W * C).astype(jnp.float32)
    shift_row = jnp.tile(shift, W).reshape(1, W * C).astype(jnp.float32)
    return scale_row, shift_row


@functools.partial(jax.jit, static_argnames=("matmul_dtype", "images_per_tile"))
def basicblock_forward(x_nhwc, params, *, matmul_dtype=jnp.bfloat16,
                       images_per_tile=1):
    """x_nhwc: (N,H,W,C) float32.  params: (w1, g1, b1, w2, g2, b2) with
    w* in HWIO (3,3,Cin,Cout) and g*/b* of shape (C,)."""
    w1, g1, b1, w2, g2, b2 = params
    N, H, W, Cin = x_nhwc.shape
    Cout = w1.shape[-1]
    assert w1.shape == (3, 3, Cin, Cout) and w2.shape == (3, 3, Cout, Cout)
    # Identity-residual configuration only (stride=1, downsample=None).
    assert Cin == Cout, "identity residual requires inps == oups"
    NB = images_per_tile
    assert N % NB == 0
    n_tiles = N // NB
    WC = W * Cin
    NHW = N * H * W

    # Lane-dense 2-D presentation: (N*H, W*C) -> full-lane vld/vst.
    x2d = x_nhwc.reshape(N * H, WC)
    band1 = _make_band(w1.astype(jnp.float32), W).astype(matmul_dtype)
    band2 = _make_band(w2.astype(jnp.float32), W).astype(matmul_dtype)

    parallel = pltpu.CompilerParams(dimension_semantics=("parallel",))

    row_spec = pl.BlockSpec((NB * H, WC), lambda i: (i, 0))
    band_spec = pl.BlockSpec((3, WC, WC), lambda i: (0, 0, 0))
    stats_spec = pl.BlockSpec((1, 2, WC), lambda i: (i, 0, 0))
    bcast_spec = pl.BlockSpec((1, WC), lambda i: (0, 0))

    conv_outs = (jax.ShapeDtypeStruct((N * H, WC), jnp.float32),
                 jax.ShapeDtypeStruct((n_tiles, 2, WC), jnp.float32))
    pad_scratch = pltpu.VMEM((NB, H + 2, WC), matmul_dtype)

    # ---- pass 1: conv1 + BN1 partial stats -----------------------------------
    y1, stats1 = pl.pallas_call(
        functools.partial(conv1_kernel, matmul_dtype=matmul_dtype),
        out_shape=conv_outs,
        grid=(n_tiles,),
        in_specs=[row_spec, band_spec],
        out_specs=(row_spec, stats_spec),
        scratch_shapes=[pad_scratch],
        compiler_params=parallel,
    )(x2d, band1)
    scale1, shift1 = _fold_bn(stats1, g1.astype(jnp.float32),
                              b1.astype(jnp.float32), NHW, W)

    # ---- pass 2: bn1 + relu + conv2 + BN2 partial stats -----------------------
    y2, stats2 = pl.pallas_call(
        functools.partial(bn_relu_conv2_kernel, matmul_dtype=matmul_dtype),
        out_shape=conv_outs,
        grid=(n_tiles,),
        in_specs=[row_spec, bcast_spec, bcast_spec, band_spec],
        out_specs=(row_spec, stats_spec),
        scratch_shapes=[pad_scratch],
        compiler_params=parallel,
    )(y1, scale1, shift1, band2)
    scale2, shift2 = _fold_bn(stats2, g2.astype(jnp.float32),
                              b2.astype(jnp.float32), NHW, W)

    # ---- pass 3: bn2 + residual add + relu ------------------------------------
    out2d = pl.pallas_call(
        bn_add_relu_kernel,
        out_shape=jax.ShapeDtypeStruct((N * H, WC), x_nhwc.dtype),
        grid=(n_tiles,),
        in_specs=[row_spec, row_spec, bcast_spec, bcast_spec],
        out_specs=row_spec,
        compiler_params=parallel,
    )(y2, x2d, scale2, shift2)

    return out2d.reshape(N, H, W, Cout)


# ------------------------- pure-JAX reference (sanity check) ------------------
def reference_forward(x_nhwc, params):
    w1, g1, b1, w2, g2, b2 = params

    def bn(y, g, b):
        m = jnp.mean(y, axis=(0, 1, 2), keepdims=True)
        v = jnp.mean((y - m) ** 2, axis=(0, 1, 2), keepdims=True)
        return (y - m) / jnp.sqrt(v + EPS) * g + b

    def conv(y, w):
        return jax.lax.conv_general_dilated(
            y, w, window_strides=(1, 1), padding=((1, 1), (1, 1)),
            dimension_numbers=('NHWC', 'HWIO', 'NHWC'),
            precision=jax.lax.Precision.HIGHEST)

    y = jnp.maximum(bn(conv(x_nhwc, w1), g1, b1), 0.0)
    y = bn(conv(y, w2), g2, b2)
    return jnp.maximum(y + x_nhwc, 0.0)


if __name__ == "__main__":
    # BasicBlock(inps=16, oups=16, stride=1, downsample=None);
    # W * C = 8 * 16 = 128 -> every lane-dense row is exactly one full lane set.
    N, H, W, C = 2, 8, 8, 16

    key = jax.random.PRNGKey(0)
    ks = jax.random.split(key, 6)

    # NCHW input (PyTorch convention) -> NHWC for the kernel.
    x_nchw = jax.random.normal(ks[0], (N, C, H, W), jnp.float32)
    x_nhwc = jnp.transpose(x_nchw, (0, 2, 3, 1))

    # Conv weights in HWIO layout (equivalent to permuting PyTorch's OIHW).
    w1 = 0.2 * jax.random.normal(ks[1], (3, 3, C, C), jnp.float32)
    w2 = 0.2 * jax.random.normal(ks[2], (3, 3, C, C), jnp.float32)
    g1 = 1.0 + 0.1 * jax.random.normal(ks[3], (C,), jnp.float32)
    b1 = 0.1 * jax.random.normal(ks[4], (C,), jnp.float32)
    g2 = 1.0 + 0.1 * jax.random.normal(ks[5], (C,), jnp.float32)
    b2 = jnp.zeros((C,), jnp.float32)
    params = (w1, g1, b1, w2, g2, b2)

    ref = jax.block_until_ready(reference_forward(x_nhwc, params))

    # Tight functional check: f32 MXU operands.
    out_f32 = jax.block_until_ready(
        basicblock_forward(x_nhwc, params, matmul_dtype=jnp.float32))
    assert out_f32.shape == x_nhwc.shape
    assert jnp.max(jnp.abs(out_f32 - ref)) < 5e-3, "f32 kernel mismatch"

    # Performance configuration: bf16 MXU operands, f32 accumulation.
    # Looser bound — only checks bf16 rounding drift; logic verified above.
    out_bf16 = jax.block_until_ready(
        basicblock_forward(x_nhwc, params, matmul_dtype=jnp.bfloat16))
    assert out_bf16.shape == x_nhwc.shape
    assert jnp.max(jnp.abs(out_bf16 - ref)) < 1e-1, "bf16 kernel drifted"

    print("KERNEL_OK")
</pallas_src>

<mosaic_0001>
module attributes {stable_mosaic.version = 11 : i64} {
  func.func @conv1_kernel(%arg0: i32, %arg1: memref<8x128xf32, #tpu.memory_space<vmem>>, %arg2: memref<3x128x128xf32, #tpu.memory_space<vmem>>, %arg3: memref<8x128xf32, #tpu.memory_space<vmem>>, %arg4: memref<1x2x128xf32, #tpu.memory_space<vmem>>, %arg5: memref<1x10x128xf32, #tpu.memory_space<vmem>>) attributes {dimension_semantics = [#tpu.dimension_semantics<parallel>], iteration_bounds = array<i64: 2>, scalar_prefetch = 0 : i64, scratch_operands = 1 : i64, tpu.core_type = #tpu.core_type<tc>, window_params = [{transform_indices = @transform_0, window_bounds = array<i64: 8, 128>}, {pipeline_mode = #tpu.pipeline_mode<synchronous>, transform_indices = @transform_1, window_bounds = array<i64: 3, 128, 128>}, {transform_indices = @transform_2, window_bounds = array<i64: 8, 128>}, {transform_indices = @transform_3, window_bounds = array<i64: 1, 2, 128>}]} {
    %c0 = arith.constant 0 : index
    %c0_0 = arith.constant 0 : index
    %0 = vector.load %arg1[%c0, %c0_0] : memref<8x128xf32, #tpu.memory_space<vmem>>, vector<8x128xf32>
    %cst = arith.constant 0.000000e+00 : f32
    %1 = vector.broadcast %cst : f32 to vector<1x1x128xf32>
    %c0_1 = arith.constant 0 : index
    %c0_2 = arith.constant 0 : index
    %c0_3 = arith.constant 0 : index
    %2 = vector.load %arg5[%c0_1, %c0_2, %c0_3] : memref<1x10x128xf32, #tpu.memory_space<vmem>>, vector<1x1x128xf32>
    tpu.vector_store %arg5[%c0_1, %c0_2, %c0_3], %1 {strides = array<i32>} : memref<1x10x128xf32, #tpu.memory_space<vmem>>, vector<1x1x128xf32>,
    %cst_4 = arith.constant 0.000000e+00 : f32
    %3 = vector.broadcast %cst_4 : f32 to vector<1x1x128xf32>
    %c0_5 = arith.constant 0 : index
    %c9 = arith.constant 9 : index
    %c0_6 = arith.constant 0 : index
    %4 = vector.load %arg5[%c0_5, %c9, %c0_6] : memref<1x10x128xf32, #tpu.memory_space<vmem>>, vector<1x1x128xf32>
    tpu.vector_store %arg5[%c0_5, %c9, %c0_6], %3 {strides = array<i32>} : memref<1x10x128xf32, #tpu.memory_space<vmem>>, vector<1x1x128xf32>,
    %5 = vector.shape_cast %0 : vector<8x128xf32> to vector<1x8x128xf32>
    %c0_7 = arith.constant 0 : index
    %c1 = arith.constant 1 : index
    %c0_8 = arith.constant 0 : index
    %6 = vector.load %arg5[%c0_7, %c1, %c0_8] : memref<1x10x128xf32, #tpu.memory_space<vmem>>, vector<1x8x128xf32>
    tpu.vector_store %arg5[%c0_7, %c1, %c0_8], %5 {strides = array<i32>} : memref<1x10x128xf32, #tpu.memory_space<vmem>>, vector<1x8x128xf32>,
    %cst_9 = arith.constant 0.000000e+00 : f32
    %7 = vector.broadcast %cst_9 : f32 to vector<8x128xf32>
    %c0_10 = arith.constant 0 : index
    %c0_11 = arith.constant 0 : index
    %c0_12 = arith.constant 0 : index
    %8 = vector.load %arg5[%c0_10, %c0_11, %c0_12] : memref<1x10x128xf32, #tpu.memory_space<vmem>>, vector<1x8x128xf32>
    %9 = vector.shape_cast %8 : vector<1x8x128xf32> to vector<8x128xf32>
    %c0_13 = arith.constant 0 : index
    %c0_14 = arith.constant 0 : index
    %c0_15 = arith.constant 0 : index
    %10 = vector.load %arg2[%c0_13, %c0_14, %c0_15] : memref<3x128x128xf32, #tpu.memory_space<vmem>>, vector<1x128x128xf32>
    %11 = vector.shape_cast %10 : vector<1x128x128xf32> to vector<128x128xf32>
    %cst_16 = arith.constant dense<0.000000e+00> : vector<8x128xf32>
    %12 = tpu.matmul %9, %11, %cst_16 {dimension_numbers = #tpu.dot_dimension_numbers<[1], [0], [0], [1], [0, 0, 1, 1], [], []>} : vector<8x128xf32>, vector<128x128xf32>, vector<8x128xf32> -> vector<8x128xf32>
    %13 = arith.addf %7, %12 : vector<8x128xf32>
    %c0_17 = arith.constant 0 : index
    %c1_18 = arith.constant 1 : index
    %c0_19 = arith.constant 0 : index
    %14 = vector.load %arg5[%c0_17, %c1_18, %c0_19] : memref<1x10x128xf32, #tpu.memory_space<vmem>>, vector<1x8x128xf32>
    %15 = vector.shape_cast %14 : vector<1x8x128xf32> to vector<8x128xf32>
    %c1_20 = arith.constant 1 : index
    %c0_21 = arith.constant 0 : index
    %c0_22 = arith.constant 0 : index
    %16 = vector.load %arg2[%c1_20, %c0_21, %c0_22] : memref<3x128x128xf32, #tpu.memory_space<vmem>>, vector<1x128x128xf32>
    %17 = vector.shape_cast %16 : vector<1x128x128xf32> to vector<128x128xf32>
    %cst_23 = arith.constant dense<0.000000e+00> : vector<8x128xf32>
    %18 = tpu.matmul %15, %17, %cst_23 {dimension_numbers = #tpu.dot_dimension_numbers<[1], [0], [0], [1], [0, 0, 1, 1], [], []>} : vector<8x128xf32>, vector<128x128xf32>, vector<8x128xf32> -> vector<8x128xf32>
    %19 = arith.addf %13, %18 : vector<8x128xf32>
    %c0_24 = arith.constant 0 : index
    %c2 = arith.constant 2 : index
    %c0_25 = arith.constant 0 : index
    %20 = vector.load %arg5[%c0_24, %c2, %c0_25] : memref<1x10x128xf32, #tpu.memory_space<vmem>>, vector<1x8x128xf32>
    %21 = vector.shape_cast %20 : vector<1x8x128xf32> to vector<8x128xf32>
    %c2_26 = arith.constant 2 : index
    %c0_27 = arith.constant 0 : index
    %c0_28 = arith.constant 0 : index
    %22 = vector.load %arg2[%c2_26, %c0_27, %c0_28] : memref<3x128x128xf32, #tpu.memory_space<vmem>>, vector<1x128x128xf32>
    %23 = vector.shape_cast %22 : vector<1x128x128xf32> to vector<128x128xf32>
    %cst_29 = arith.constant dense<0.000000e+00> : vector<8x128xf32>
    %24 = tpu.matmul %21, %23, %cst_29 {dimension_numbers = #tpu.dot_dimension_numbers<[1], [0], [0], [1], [0, 0, 1, 1], [], []>} : vector<8x128xf32>, vector<128x128xf32>, vector<8x128xf32> -> vector<8x128xf32>
    %25 = arith.addf %19, %24 : vector<8x128xf32>
    %c0_30 = arith.constant 0 : index
    %c0_31 = arith.constant 0 : index
    %26 = vector.load %arg3[%c0_30, %c0_31] : memref<8x128xf32, #tpu.memory_space<vmem>>, vector<8x128xf32>
    tpu.vector_store %arg3[%c0_30, %c0_31], %25 {strides = array<i32>} : memref<8x128xf32, #tpu.memory_space<vmem>>, vector<8x128xf32>,
    %cst_32 = arith.constant 1.000000e+00 : f32
    %27 = vector.broadcast %cst_32 : f32 to vector<1x8xf32>
    %cst_33 = arith.constant dense<0.000000e+00> : vector<1x128xf32>
    %28 = tpu.matmul %27, %25, %cst_33 {dimension_numbers = #tpu.dot_dimension_numbers<[1], [0], [0], [1], [0, 0, 1, 1], [], []>} : vector<1x8xf32>, vector<8x128xf32>, vector<1x128xf32> -> vector<1x128xf32>
    %29 = arith.mulf %25, %25 : vector<8x128xf32>
    %cst_34 = arith.constant dense<0.000000e+00> : vector<1x128xf32>
    %30 = tpu.matmul %27, %29, %cst_34 {dimension_numbers = #tpu.dot_dimension_numbers<[1], [0], [0], [1], [0, 0, 1, 1], [], []>} : vector<1x8xf32>, vector<8x128xf32>, vector<1x128xf32> -> vector<1x128xf32>
    %31 = tpu.concatenate %28, %30 in 0 : vector<1x128xf32>, vector<1x128xf32> -> vector<2x128xf32>
    %32 = vector.shape_cast %31 : vector<2x128xf32> to vector<1x2x128xf32>
    %c0_35 = arith.constant 0 : index
    %c0_36 = arith.constant 0 : index
    %c0_37 = arith.constant 0 : index
    %33 = vector.load %arg4[%c0_35, %c0_36, %c0_37] : memref<1x2x128xf32, #tpu.memory_space<vmem>>, vector<1x2x128xf32>
    tpu.vector_store %arg4[%c0_35, %c0_36, %c0_37], %32 {strides = array<i32>} : memref<1x2x128xf32, #tpu.memory_space<vmem>>, vector<1x2x128xf32>,
    return
  }
  func.func @transform_0(%arg0: i32) -> (i32, i32) {
    %c0_i32 = arith.constant 0 : i32
    %c0_i32_0 = arith.constant 0 : i32
    return %arg0, %c0_i32 : i32, i32
  }
  func.func @transform_1(%arg0: i32) -> (i32, i32, i32) {
    %c0_i32 = arith.constant 0 : i32
    %c0_i32_0 = arith.constant 0 : i32
    %c0_i32_1 = arith.constant 0 : i32
    %c0_i32_2 = arith.constant 0 : i32
    return %c0_i32, %c0_i32_0, %c0_i32_1 : i32, i32, i32
  }
  func.func @transform_2(%arg0: i32) -> (i32, i32) {
    %c0_i32 = arith.constant 0 : i32
    %c0_i32_0 = arith.constant 0 : i32
    return %arg0, %c0_i32 : i32, i32
  }
  func.func @transform_3(%arg0: i32) -> (i32, i32, i32) {
    %c0_i32 = arith.constant 0 : i32
    %c0_i32_0 = arith.constant 0 : i32
    %c0_i32_1 = arith.constant 0 : i32
    return %arg0, %c0_i32, %c0_i32_0 : i32, i32, i32
  }
}

module attributes {stable_mosaic.version = 11 : i64} {
  func.func @bn_relu_conv2_kernel(%arg0: i32, %arg1: memref<8x128xf32, #tpu.memory_space<vmem>>, %arg2: memref<1x128xf32, #tpu.memory_space<vmem>>, %arg3: memref<1x128xf32, #tpu.memory_space<vmem>>, %arg4: memref<3x128x128xf32, #tpu.memory_space<vmem>>, %arg5: memref<8x128xf32, #tpu.memory_space<vmem>>, %arg6: memref<1x2x128xf32, #tpu.memory_space<vmem>>, %arg7: memref<1x10x128xf32, #tpu.memory_space<vmem>>) attributes {dimension_semantics = [#tpu.dimension_semantics<parallel>], iteration_bounds = array<i64: 2>, scalar_prefetch = 0 : i64, scratch_operands = 1 : i64, tpu.core_type = #tpu.core_type<tc>, window_params = [{transform_indices = @transform_0, window_bounds = array<i64: 8, 128>}, {pipeline_mode = #tpu.pipeline_mode<synchronous>, transform_indices = @transform_1, window_bounds = array<i64: 1, 128>}, {pipeline_mode = #tpu.pipeline_mode<synchronous>, transform_indices = @transform_2, window_bounds = array<i64: 1, 128>}, {pipeline_mode = #tpu.pipeline_mode<synchronous>, transform_indices = @transform_3, window_bounds = array<i64: 3, 128, 128>}, {transform_indices = @transform_4, window_bounds = array<i64: 8, 128>}, {transform_indices = @transform_5, window_bounds = array<i64: 1, 2, 128>}]} {
    %c0 = arith.constant 0 : index
    %c0_0 = arith.constant 0 : index
    %0 = vector.load %arg1[%c0, %c0_0] : memref<8x128xf32, #tpu.memory_space<vmem>>, vector<8x128xf32>
    %c0_1 = arith.constant 0 : index
    %c0_2 = arith.constant 0 : index
    %1 = vector.load %arg2[%c0_1, %c0_2] : memref<1x128xf32, #tpu.memory_space<vmem>>, vector<1x128xf32>
    %2 = vector.broadcast %1 : vector<1x128xf32> to vector<8x128xf32>
    %3 = arith.mulf %0, %2 : vector<8x128xf32>
    %c0_3 = arith.constant 0 : index
    %c0_4 = arith.constant 0 : index
    %4 = vector.load %arg3[%c0_3, %c0_4] : memref<1x128xf32, #tpu.memory_space<vmem>>, vector<1x128xf32>
    %5 = vector.broadcast %4 : vector<1x128xf32> to vector<8x128xf32>
    %6 = arith.addf %3, %5 : vector<8x128xf32>
    %cst = arith.constant 0.000000e+00 : f32
    %7 = vector.broadcast %cst : f32 to vector<8x128xf32>
    %8 = arith.maximumf %6, %7 : vector<8x128xf32>
    %cst_5 = arith.constant 0.000000e+00 : f32
    %9 = vector.broadcast %cst_5 : f32 to vector<1x1x128xf32>
    %c0_6 = arith.constant 0 : index
    %c0_7 = arith.constant 0 : index
    %c0_8 = arith.constant 0 : index
    %10 = vector.load %arg7[%c0_6, %c0_7, %c0_8] : memref<1x10x128xf32, #tpu.memory_space<vmem>>, vector<1x1x128xf32>
    tpu.vector_store %arg7[%c0_6, %c0_7, %c0_8], %9 {strides = array<i32>} : memref<1x10x128xf32, #tpu.memory_space<vmem>>, vector<1x1x128xf32>,
    %cst_9 = arith.constant 0.000000e+00 : f32
    %11 = vector.broadcast %cst_9 : f32 to vector<1x1x128xf32>
    %c0_10 = arith.constant 0 : index
    %c9 = arith.constant 9 : index
    %c0_11 = arith.constant 0 : index
    %12 = vector.load %arg7[%c0_10, %c9, %c0_11] : memref<1x10x128xf32, #tpu.memory_space<vmem>>, vector<1x1x128xf32>
    tpu.vector_store %arg7[%c0_10, %c9, %c0_11], %11 {strides = array<i32>} : memref<1x10x128xf32, #tpu.memory_space<vmem>>, vector<1x1x128xf32>,
    %13 = vector.shape_cast %8 : vector<8x128xf32> to vector<1x8x128xf32>
    %c0_12 = arith.constant 0 : index
    %c1 = arith.constant 1 : index
    %c0_13 = arith.constant 0 : index
    %14 = vector.load %arg7[%c0_12, %c1, %c0_13] : memref<1x10x128xf32, #tpu.memory_space<vmem>>, vector<1x8x128xf32>
    tpu.vector_store %arg7[%c0_12, %c1, %c0_13], %13 {strides = array<i32>} : memref<1x10x128xf32, #tpu.memory_space<vmem>>, vector<1x8x128xf32>,
    %cst_14 = arith.constant 0.000000e+00 : f32
    %15 = vector.broadcast %cst_14 : f32 to vector<8x128xf32>
    %c0_15 = arith.constant 0 : index
    %c0_16 = arith.constant 0 : index
    %c0_17 = arith.constant 0 : index
    %16 = vector.load %arg7[%c0_15, %c0_16, %c0_17] : memref<1x10x128xf32, #tpu.memory_space<vmem>>, vector<1x8x128xf32>
    %17 = vector.shape_cast %16 : vector<1x8x128xf32> to vector<8x128xf32>
    %c0_18 = arith.constant 0 : index
    %c0_19 = arith.constant 0 : index
    %c0_20 = arith.constant 0 : index
    %18 = vector.load %arg4[%c0_18, %c0_19, %c0_20] : memref<3x128x128xf32, #tpu.memory_space<vmem>>, vector<1x128x128xf32>
    %19 = vector.shape_cast %18 : vector<1x128x128xf32> to vector<128x128xf32>
    %cst_21 = arith.constant dense<0.000000e+00> : vector<8x128xf32>
    %20 = tpu.matmul %17, %19, %cst_21 {dimension_numbers = #tpu.dot_dimension_numbers<[1], [0], [0], [1], [0, 0, 1, 1], [], []>} : vector<8x128xf32>, vector<128x128xf32>, vector<8x128xf32> -> vector<8x128xf32>
    %21 = arith.addf %15, %20 : vector<8x128xf32>
    %c0_22 = arith.constant 0 : index
    %c1_23 = arith.constant 1 : index
    %c0_24 = arith.constant 0 : index
    %22 = vector.load %arg7[%c0_22, %c1_23, %c0_24] : memref<1x10x128xf32, #tpu.memory_space<vmem>>, vector<1x8x128xf32>
    %23 = vector.shape_cast %22 : vector<1x8x128xf32> to vector<8x128xf32>
    %c1_25 = arith.constant 1 : index
    %c0_26 = arith.constant 0 : index
    %c0_27 = arith.constant 0 : index
    %24 = vector.load %arg4[%c1_25, %c0_26, %c0_27] : memref<3x128x128xf32, #tpu.memory_space<vmem>>, vector<1x128x128xf32>
    %25 = vector.shape_cast %24 : vector<1x128x128xf32> to vector<128x128xf32>
    %cst_28 = arith.constant dense<0.000000e+00> : vector<8x128xf32>
    %26 = tpu.matmul %23, %25, %cst_28 {dimension_numbers = #tpu.dot_dimension_numbers<[1], [0], [0], [1], [0, 0, 1, 1], [], []>} : vector<8x128xf32>, vector<128x128xf32>, vector<8x128xf32> -> vector<8x128xf32>
    %27 = arith.addf %21, %26 : vector<8x128xf32>
    %c0_29 = arith.constant 0 : index
    %c2 = arith.constant 2 : index
    %c0_30 = arith.constant 0 : index
    %28 = vector.load %arg7[%c0_29, %c2, %c0_30] : memref<1x10x128xf32, #tpu.memory_space<vmem>>, vector<1x8x128xf32>
    %29 = vector.shape_cast %28 : vector<1x8x128xf32> to vector<8x128xf32>
    %c2_31 = arith.constant 2 : index
    %c0_32 = arith.constant 0 : index
    %c0_33 = arith.constant 0 : index
    %30 = vector.load %arg4[%c2_31, %c0_32, %c0_33] : memref<3x128x128xf32, #tpu.memory_space<vmem>>, vector<1x128x128xf32>
    %31 = vector.shape_cast %30 : vector<1x128x128xf32> to vector<128x128xf32>
    %cst_34 = arith.constant dense<0.000000e+00> : vector<8x128xf32>
    %32 = tpu.matmul %29, %31, %cst_34 {dimension_numbers = #tpu.dot_dimension_numbers<[1], [0], [0], [1], [0, 0, 1, 1], [], []>} : vector<8x128xf32>, vector<128x128xf32>, vector<8x128xf32> -> vector<8x128xf32>
    %33 = arith.addf %27, %32 : vector<8x128xf32>
    %c0_35 = arith.constant 0 : index
    %c0_36 = arith.constant 0 : index
    %34 = vector.load %arg5[%c0_35, %c0_36] : memref<8x128xf32, #tpu.memory_space<vmem>>, vector<8x128xf32>
    tpu.vector_store %arg5[%c0_35, %c0_36], %33 {strides = array<i32>} : memref<8x128xf32, #tpu.memory_space<vmem>>, vector<8x128xf32>,
    %cst_37 = arith.constant 1.000000e+00 : f32
    %35 = vector.broadcast %cst_37 : f32 to vector<1x8xf32>
    %cst_38 = arith.constant dense<0.000000e+00> : vector<1x128xf32>
    %36 = tpu.matmul %35, %33, %cst_38 {dimension_numbers = #tpu.dot_dimension_numbers<[1], [0], [0], [1], [0, 0, 1, 1], [], []>} : vector<1x8xf32>, vector<8x128xf32>, vector<1x128xf32> -> vector<1x128xf32>
    %37 = arith.mulf %33, %33 : vector<8x128xf32>
    %cst_39 = arith.constant dense<0.000000e+00> : vector<1x128xf32>
    %38 = tpu.matmul %35, %37, %cst_39 {dimension_numbers = #tpu.dot_dimension_numbers<[1], [0], [0], [1], [0, 0, 1, 1], [], []>} : vector<1x8xf32>, vector<8x128xf32>, vector<1x128xf32> -> vector<1x128xf32>
    %39 = tpu.concatenate %36, %38 in 0 : vector<1x128xf32>, vector<1x128xf32> -> vector<2x128xf32>
    %40 = vector.shape_cast %39 : vector<2x128xf32> to vector<1x2x128xf32>
    %c0_40 = arith.constant 0 : index
    %c0_41 = arith.constant 0 : index
    %c0_42 = arith.constant 0 : index
    %41 = vector.load %arg6[%c0_40, %c0_41, %c0_42] : memref<1x2x128xf32, #tpu.memory_space<vmem>>, vector<1x2x128xf32>
    tpu.vector_store %arg6[%c0_40, %c0_41, %c0_42], %40 {strides = array<i32>} : memref<1x2x128xf32, #tpu.memory_space<vmem>>, vector<1x2x128xf32>,
    return
  }
  func.func @transform_0(%arg0: i32) -> (i32, i32) {
    %c0_i32 = arith.constant 0 : i32
    %c0_i32_0 = arith.constant 0 : i32
    return %arg0, %c0_i32 : i32, i32
  }
  func.func @transform_1(%arg0: i32) -> (i32, i32) {
    %c0_i32 = arith.constant 0 : i32
    %c0_i32_0 = arith.constant 0 : i32
    %c0_i32_1 = arith.constant 0 : i32
    return %c0_i32, %c0_i32_0 : i32, i32
  }
  func.func @transform_2(%arg0: i32) -> (i32, i32) {
    %c0_i32 = arith.constant 0 : i32
    %c0_i32_0 = arith.constant 0 : i32
    %c0_i32_1 = arith.constant 0 : i32
    return %c0_i32, %c0_i32_0 : i32, i32
  }
  func.func @transform_3(%arg0: i32) -> (i32, i32, i32) {
    %c0_i32 = arith.constant 0 : i32
    %c0_i32_0 = arith.constant 0 : i32
    %c0_i32_1 = arith.constant 0 : i32
    %c0_i32_2 = arith.constant 0 : i32
    return %c0_i32, %c0_i32_0, %c0_i32_1 : i32, i32, i32
  }
  func.func @transform_4(%arg0: i32) -> (i32, i32) {
    %c0_i32 = arith.constant 0 : i32
    %c0_i32_0 = arith.constant 0 : i32
    return %arg0, %c0_i32 : i32, i32
  }
  func.func @transform_5(%arg0: i32) -> (i32, i32, i32) {
    %c0_i32 = arith.constant 0 : i32
    %c0_i32_0 = arith.constant 0 : i32
    %c0_i32_1 = arith.constant 0 : i32
    return %arg0, %c0_i32, %c0_i32_0 : i32, i32, i32
  }
}

module attributes {stable_mosaic.version = 11 : i64} {
  func.func @bn_add_relu_kernel(%arg0: i32, %arg1: memref<8x128xf32, #tpu.memory_space<vmem>>, %arg2: memref<8x128xf32, #tpu.memory_space<vmem>>, %arg3: memref<1x128xf32, #tpu.memory_space<vmem>>, %arg4: memref<1x128xf32, #tpu.memory_space<vmem>>, %arg5: memref<8x128xf32, #tpu.memory_space<vmem>>) attributes {dimension_semantics = [#tpu.dimension_semantics<parallel>], iteration_bounds = array<i64: 2>, scalar_prefetch = 0 : i64, scratch_operands = 0 : i64, tpu.core_type = #tpu.core_type<tc>, window_params = [{transform_indices = @transform_0, window_bounds = array<i64: 8, 128>}, {transform_indices = @transform_1, window_bounds = array<i64: 8, 128>}, {pipeline_mode = #tpu.pipeline_mode<synchronous>, transform_indices = @transform_2, window_bounds = array<i64: 1, 128>}, {pipeline_mode = #tpu.pipeline_mode<synchronous>, transform_indices = @transform_3, window_bounds = array<i64: 1, 128>}, {transform_indices = @transform_4, window_bounds = array<i64: 8, 128>}]} {
    %c0 = arith.constant 0 : index
    %c0_0 = arith.constant 0 : index
    %0 = vector.load %arg1[%c0, %c0_0] : memref<8x128xf32, #tpu.memory_space<vmem>>, vector<8x128xf32>
    %c0_1 = arith.constant 0 : index
    %c0_2 = arith.constant 0 : index
    %1 = vector.load %arg3[%c0_1, %c0_2] : memref<1x128xf32, #tpu.memory_space<vmem>>, vector<1x128xf32>
    %2 = vector.broadcast %1 : vector<1x128xf32> to vector<8x128xf32>
    %3 = arith.mulf %0, %2 : vector<8x128xf32>
    %c0_3 = arith.constant 0 : index
    %c0_4 = arith.constant 0 : index
    %4 = vector.load %arg4[%c0_3, %c0_4] : memref<1x128xf32, #tpu.memory_space<vmem>>, vector<1x128xf32>
    %5 = vector.broadcast %4 : vector<1x128xf32> to vector<8x128xf32>
    %6 = arith.addf %3, %5 : vector<8x128xf32>
    %c0_5 = arith.constant 0 : index
    %c0_6 = arith.constant 0 : index
    %7 = vector.load %arg2[%c0_5, %c0_6] : memref<8x128xf32, #tpu.memory_space<vmem>>, vector<8x128xf32>
    %8 = arith.addf %6, %7 : vector<8x128xf32>
    %cst = arith.constant 0.000000e+00 : f32
    %9 = vector.broadcast %cst : f32 to vector<8x128xf32>
    %10 = arith.maximumf %8, %9 : vector<8x128xf32>
    %c0_7 = arith.constant 0 : index
    %c0_8 = arith.constant 0 : index
    %11 = vector.load %arg5[%c0_7, %c0_8] : memref<8x128xf32, #tpu.memory_space<vmem>>, vector<8x128xf32>
    tpu.vector_store %arg5[%c0_7, %c0_8], %10 {strides = array<i32>} : memref<8x128xf32, #tpu.memory_space<vmem>>, vector<8x128xf32>,
    return
  }
  func.func @transform_0(%arg0: i32) -> (i32, i32) {
    %c0_i32 = arith.constant 0 : i32
    %c0_i32_0 = arith.constant 0 : i32
    return %arg0, %c0_i32 : i32, i32
  }
  func.func @transform_1(%arg0: i32) -> (i32, i32) {
    %c0_i32 = arith.constant 0 : i32
    %c0_i32_0 = arith.constant 0 : i32
    return %arg0, %c0_i32 : i32, i32
  }
  func.func @transform_2(%arg0: i32) -> (i32, i32) {
    %c0_i32 = arith.constant 0 : i32
    %c0_i32_0 = arith.constant 0 : i32
    %c0_i32_1 = arith.constant 0 : i32
    return %c0_i32, %c0_i32_0 : i32, i32
  }
  func.func @transform_3(%arg0: i32) -> (i32, i32) {
    %c0_i32 = arith.constant 0 : i32
    %c0_i32_0 = arith.constant 0 : i32
    %c0_i32_1 = arith.constant 0 : i32
    return %c0_i32, %c0_i32_0 : i32, i32
  }
  func.func @transform_4(%arg0: i32) -> (i32, i32) {
    %c0_i32 = arith.constant 0 : i32
    %c0_i32_0 = arith.constant 0 : i32
    return %arg0, %c0_i32 : i32, i32
  }
}

</mosaic_0001>

<llo_original>
// kernel: squeeze.4
$region0: #{squeeze.4}
  %s0 = inlined_call_operand.vmem [shape: f32[128], index: 0, kind: input, shape index: {}]
  %s1 = inlined_call_operand.vmem [shape: f32[8,16], index: 1, kind: output, shape index: {}]
  $region1: #{squeeze.4} parent=0
    #allocation0 [shape = 'u8[4096]{0}', space=vmem, size = 0x1000, scoped, tag = 'scoped mem for input reshape']
    %s3 = sshllo.u32 0, 1
    %v4 = vld [vmem:[%s0] sm:%s3]
    %5 = vst [vmem:[#allocation0] sm:%s3] %v4
    %v6 = vld [vmem:[#allocation0] sm:$0x1]
    %vm7 = vcmask 130048
    %8 = vst.msk [vmem:[%s1] sm:$0x1] %vm7, %v6
    %v9 = vld [vmem:[#allocation0] sm:$0x1]
    %10 = vrot.lane.b32.xlu0 %v9, 112
    %v11 = vpop.permute.xlu0 %10
    %vm12 = vcmask 130048
    %s13 = scalar_lea.vmem %s1, 1
    %14 = vst.msk [vmem:[%s13] sm:$0x1] %vm12, %v11
    %v15 = vld [vmem:[#allocation0] sm:$0x1]
    %16 = vrot.lane.b32.xlu0 %v15, 96
    %v17 = vpop.permute.xlu0 %16
    %vm18 = vcmask 130048
    %s19 = scalar_lea.vmem %s1, 2
    %20 = vst.msk [vmem:[%s19] sm:$0x1] %vm18, %v17
    %v21 = vld [vmem:[#allocation0] sm:$0x1]
    %22 = vrot.lane.b32.xlu0 %v21, 80
    %v23 = vpop.permute.xlu0 %22
    %vm24 = vcmask 130048
    %s25 = scalar_lea.vmem %s1, 3
    %26 = vst.msk [vmem:[%s25] sm:$0x1] %vm24, %v23
    %v27 = vld [vmem:[#allocation0] sm:$0x1]
    %28 = vrot.lane.b32.xlu0 %v27, 64
    %v29 = vpop.permute.xlu0 %28
    %vm30 = vcmask 130048
    %s31 = scalar_lea.vmem %s1, 4
    %32 = vst.msk [vmem:[%s31] sm:$0x1] %vm30, %v29
    %v33 = vld [vmem:[#allocation0] sm:$0x1]
    %34 = vrot.lane.b32.xlu0 %v33, 48
    %v35 = vpop.permute.xlu0 %34
    %vm36 = vcmask 130048
    %s37 = scalar_lea.vmem %s1, 5
    %38 = vst.msk [vmem:[%s37] sm:$0x1] %vm36, %v35
    %v39 = vld [vmem:[#allocation0] sm:$0x1]
    %40 = vrot.lane.b32.xlu0 %v39, 32
    %v41 = vpop.permute.xlu0 %40
    %vm42 = vcmask 130048
    %s43 = scalar_lea.vmem %s1, 6
    %44 = vst.msk [vmem:[%s43] sm:$0x1] %vm42, %v41
    %v45 = vld [vmem:[#allocation0] sm:$0x1]
    %46 = vrot.lane.b32.xlu0 %v45, 16
    %v47 = vpop.permute.xlu0 %46
    %vm48 = vcmask 130048
    %s49 = scalar_lea.vmem %s1, 7
    %50 = vst.msk [vmem:[%s49] sm:$0x1] %vm48, %v47

// kernel: tile.23
$region0: #{tile.23}
  #allocation0 [shape = 's32[1]{0}', space=sflag, size = 0x4, scoped, tag = 'scoped memory for tile.23']
  %s0 = inlined_call_operand.vmem [shape: f32[16], index: 0, kind: input, shape index: {}]
  %s1 = inlined_call_operand.vmem [shape: f32[8,16], index: 1, kind: output, shape index: {}]
  // Predicated region
  $region2: #{tile.23} parent=0 // pred_check
    _
  $region3: #{tile.23} parent=0 // pred_check_branch
    %3 = sbr.rel (0) target = $region5
  $region4: #{tile.23} parent=0 // pred_region
    _
  $region5: #{tile.23} parent=0 // pred_fallthru
    _
  %v4 = vld [vmem:[%s0] ss:$0 sm:$0xff]
  %5 = vst [vmem:[%s1] sm:$0xff] %v4

// kernel: tile.24
$region0: #{tile.24}
  %s0 = inlined_call_operand.vmem [shape: f32[8,16], index: 0, kind: input, shape index: {}]
  %s1 = inlined_call_operand.vmem [shape: f32[1,128], index: 1, kind: output, shape index: {}]
  $region1: #{tile.24} parent=0
    #allocation0 [shape = 'u8[4096]{0}', space=vmem, size = 0x1000, scoped, tag = 'scoped mem for output reshape']
    %v2 = vld [vmem:[%s0] sm:$0x1]
    %vm3 = vcmask 130048
    %4 = vst.msk [vmem:[#allocation0] sm:$0x1] %vm3, %v2
    %s5 = scalar_lea.vmem %s0, 7
    %v6 = vld [vmem:[%s5] sm:$0x1]
    %7 = vrot.lane.b32.xlu0 %v6, 112
    %v8 = vpop.permute.xlu0 %7
    %vm9 = vcmask 1048448
    %10 = vst.msk [vmem:[#allocation0] sm:$0x1] %vm9, %v8
    %s11 = scalar_lea.vmem %s0, 6
    %v12 = vld [vmem:[%s11] sm:$0x1]
    %13 = vrot.lane.b32.xlu0 %v12, 96
    %v14 = vpop.permute.xlu0 %13
    %vm15 = vcmask 917248
    %16 = vst.msk [vmem:[#allocation0] sm:$0x1] %vm15, %v14
    %s17 = scalar_lea.vmem %s0, 5
    %v18 = vld [vmem:[%s17] sm:$0x1]
    %19 = vrot.lane.b32.xlu0 %v18, 80
    %v20 = vpop.permute.xlu0 %19
    %vm21 = vcmask 786048
    %22 = vst.msk [vmem:[#allocation0] sm:$0x1] %vm21, %v20
    %s23 = scalar_lea.vmem %s0, 4
    %v24 = vld [vmem:[%s23] sm:$0x1]
    %25 = vrot.lane.b32.xlu0 %v24, 64
    %v26 = vpop.permute.xlu0 %25
    %vm27 = vcmask 654848
    %28 = vst.msk [vmem:[#allocation0] sm:$0x1] %vm27, %v26
    %s29 = scalar_lea.vmem %s0, 3
    %v30 = vld [vmem:[%s29] sm:$0x1]
    %31 = vrot.lane.b32.xlu0 %v30, 48
    %v32 = vpop.permute.xlu0 %31
    %vm33 = vcmask 523648
    %34 = vst.msk [vmem:[#allocation0] sm:$0x1] %vm33, %v32
    %s35 = scalar_lea.vmem %s0, 2
    %v36 = vld [vmem:[%s35] sm:$0x1]
    %37 = vrot.lane.b32.xlu0 %v36, 32
    %v38 = vpop.permute.xlu0 %37
    %vm39 = vcmask 392448
    %40 = vst.msk [vmem:[#allocation0] sm:$0x1] %vm39, %v38
    %s41 = scalar_lea.vmem %s0, 1
    %v42 = vld [vmem:[%s41] sm:$0x1]
    %43 = vrot.lane.b32.xlu0 %v42, 16
    %v44 = vpop.permute.xlu0 %43
    %vm45 = vcmask 261248
    %46 = vst.msk [vmem:[#allocation0] sm:$0x1] %vm45, %v44
    %s48 = sshllo.u32 0, 1
    %v50 = vld [vmem:[#allocation0] sm:%s48]
    %s51 = sshllo.u32 0, 1
    %52 = vst [vmem:[%s1] sm:%s51] %v50

// kernel: basicblock_forward.3
$region0: #{basicblock_forward.3}
  #allocation0 [shape = 'u32[]', space=smem, size = 0x4, offset = 0x4, fixed_abs, tag = 'smem constant byte address 0x4 - core index']
  #allocation1 [shape = 'u32[144,128]{1,0:T(1,128)}', space=vmem, size = 0x12000, scoped, tag = 'internal scratch']
  #allocation2 [shape = 'f32[1,10,128]{2,1,0:T(8,128)}', space=vmem, size = 0x2000, scoped, tag = 'scratch operand']
  %s0 = inlined_call_operand.vmem [shape: f32[16,128], index: 0, kind: input, shape index: {}]
  %s1 = inlined_call_operand.vmem [shape: f32[3,128,128], index: 1, kind: input, shape index: {}]
  %s2 = inlined_call_operand.vmem [shape: f32[16,128], index: 2, kind: output, shape index: {0}]
  %s3 = inlined_call_operand.vmem [shape: f32[2,2,128], index: 3, kind: output, shape index: {1}]
  %4 = xla_tuple %s2, %s3
  %s5 = sld [smem:[#allocation0]]
  $region49: #{basicblock_forward.3} parent=0
    _
  %s7 = ssub.s32 1, %s5
  %s8 = scalar_select 0, %s7, %s5
  loop: start=0, step=1, limit=4
  $region2: #{basicblock_forward.3} parent=0 // loop_pre_header
    _
  $region3: #{basicblock_forward.3} parent=0 // loop_header
    %s10 = sphi 0, %s14
    %p11 = scmp.ge.s32.totalorder %s10, 4
    %s20 = sphi 0, %s22
    %s23 = sphi 0, %s20
    %s24 = sphi 0, %s23
    %s40 = sphi 0, %s24
    %s44 = sphi 0, %s44
    %s46 = sphi 0, %s44
    %s47 = sphi 0, %s46
    %s61 = sphi 0, %s47
    %s67 = sphi 0, %s69
    %s70 = sphi 0, %s67
    %s71 = sphi 0, %s70
    %s87 = sphi 0, %s71
    %s93 = sphi 0, %s95
    %s96 = sphi 0, %s93
    %s97 = sphi 0, %s96
    %s113 = sphi 0, %s97
  $region4: #{basicblock_forward.3} parent=0 // loop_header_branch
    %13 = sbr.rel (%p11) target = $region8
  $region5: #{basicblock_forward.3} parent=0 // loop_body
    %s15 = ssub.s32 %s10, 1
    %s16 = ssub.s32 %s10, 2
    %s17 = sadd.s32 %s10, 1
    %s18 = ssub.s32 %s10, %s17
    %p19 = scmp.eq.s32.totalorder %s18, 0
    %s21 = sadd.s32 %s20, 1
    %s22 = scalar_select %p19, %s20, %s21
    %p25 = pneg %p19
    %p26 = scmp.eq.s32.totalorder %s10, 1
    %p27 = por %p25, %p26
    %p28 = scmp.ne.s32.totalorder %s20, %s23
    %p29 = scmp.eq.s32.totalorder %s10, 0
    %p30 = por %p28, %p29
    %p31 = scmp.ne.s32.totalorder %s20, %s23
    %p32 = scmp.eq.s32.totalorder %s15, 1
    %p33 = por %p31, %p32
    %p34 = scmp.ne.s32.totalorder %s23, %s24
    %p35 = scmp.eq.s32.totalorder %s15, 0
    %p36 = por %p34, %p35
    %p37 = scmp.ne.s32.totalorder %s23, %s24
    %p38 = scmp.eq.s32.totalorder %s16, 1
    %p39 = por %p37, %p38
    %p41 = scmp.ne.s32.totalorder %s24, %s40
    %p42 = scmp.eq.s32.totalorder %s16, 0
    %p43 = por %p41, %p42
    %s45 = sadd.s32 %s44, 1
    %p48 = scmp.eq.s32.totalorder %s10, 1
    %p49 = scmp.ne.s32.totalorder %s44, %s46
    %p50 = scmp.eq.s32.totalorder %s10, 0
    %p51 = por %p49, %p50
    %p52 = scmp.ne.s32.totalorder %s44, %s46
    %p53 = scmp.eq.s32.totalorder %s15, 1
    %p54 = por %p52, %p53
    %p55 = scmp.ne.s32.totalorder %s46, %s47
    %p56 = scmp.eq.s32.totalorder %s15, 0
    %p57 = por %p55, %p56
    %p58 = scmp.ne.s32.totalorder %s46, %s47
    %p59 = scmp.eq.s32.totalorder %s16, 1
    %p60 = por %p58, %p59
    %p62 = scmp.ne.s32.totalorder %s47, %s61
    %p63 = scmp.eq.s32.totalorder %s16, 0
    %p64 = por %p62, %p63
    %s65 = ssub.s32 %s10, %s17
    %p66 = scmp.eq.s32.totalorder %s65, 0
    %s68 = sadd.s32 %s67, 1
    %s69 = scalar_select %p66, %s67, %s68
    %p72 = pneg %p66
    %p73 = scmp.eq.s32.totalorder %s10, 1
    %p74 = por %p72, %p73
    %p75 = scmp.ne.s32.totalorder %s67, %s70
    %p76 = scmp.eq.s32.totalorder %s10, 0
    %p77 = por %p75, %p76
    %p78 = scmp.ne.s32.totalorder %s67, %s70
    %p79 = scmp.eq.s32.totalorder %s15, 1
    %p80 = por %p78, %p79
    %p81 = scmp.ne.s32.totalorder %s70, %s71
    %p82 = scmp.eq.s32.totalorder %s15, 0
    %p83 = por %p81, %p82
    %p84 = scmp.ne.s32.totalorder %s70, %s71
    %p85 = scmp.eq.s32.totalorder %s16, 1
    %p86 = por %p84, %p85
    %p88 = scmp.ne.s32.totalorder %s71, %s87
    %p89 = scmp.eq.s32.totalorder %s16, 0
    %p90 = por %p88, %p89
    %s91 = ssub.s32 %s10, %s17
    %p92 = scmp.eq.s32.totalorder %s91, 0
    %s94 = sadd.s32 %s93, 1
    %s95 = scalar_select %p92, %s93, %s94
    %p98 = pneg %p92
    %p99 = scmp.eq.s32.totalorder %s10, 1
    %p100 = por %p98, %p99
    %p101 = scmp.ne.s32.totalorder %s93, %s96
    %p102 = scmp.eq.s32.totalorder %s10, 0
    %p103 = por %p101, %p102
    %p104 = scmp.ne.s32.totalorder %s93, %s96
    %p105 = scmp.eq.s32.totalorder %s15, 1
    %p106 = por %p104, %p105
    %p107 = scmp.ne.s32.totalorder %s96, %s97
    %p108 = scmp.eq.s32.totalorder %s15, 0
    %p109 = por %p107, %p108
    %p110 = scmp.ne.s32.totalorder %s96, %s97
    %p111 = scmp.eq.s32.totalorder %s16, 1
    %p112 = por %p110, %p111
    %p114 = scmp.ne.s32.totalorder %s97, %s113
    %p115 = scmp.eq.s32.totalorder %s16, 0
    %p116 = por %p114, %p115
    %p117 = scmp.le.s32.totalorder 1, %s10
    %p118 = scmp.lt.s32.totalorder %s10, 3
    %p119 = pnand %p117, %p118
    %p120 = pneg %p119
    // Predicated region
    $region9: #{basicblock_forward.3} parent=5 // pred_check
      _
    $region10: #{basicblock_forward.3} parent=5 // pred_check_branch
      %122 = sbr.rel (%p119) target = $region12
    $region11: #{basicblock_forward.3} parent=5 // pred_region
      %s123 = ssub.s32 %s10, 1
      // Predicated region
      $region13: #{basicblock_forward.3} parent=11 // pred_check
        %p124 = pneg %p57
      $region14: #{basicblock_forward.3} parent=11 // pred_check_branch
        %126 = sbr.rel (%p124) target = $region16
      $region15: #{basicblock_forward.3} parent=11 // pred_region
        _
      $region16: #{basicblock_forward.3} parent=11 // pred_fallthru
        _
    $region12: #{basicblock_forward.3} parent=5 // pred_fallthru
      _
    %p127 = scmp.lt.s32.totalorder %s10, 2
    // Predicated region
    $region17: #{basicblock_forward.3} parent=5 // pred_check
      %p128 = pneg %p127
    $region18: #{basicblock_forward.3} parent=5 // pred_check_branch
      %130 = sbr.rel (%p128) target = $region20
    $region19: #{basicblock_forward.3} parent=5 // pred_region
      // Predicated region
      $region21: #{basicblock_forward.3} parent=19 // pred_check
        %p131 = pneg %p30
      $region22: #{basicblock_forward.3} parent=19 // pred_check_branch
        %133 = sbr.rel (%p131) target = $region24
      $region23: #{basicblock_forward.3} parent=19 // pred_region
        %p134 = scmp.lt.s32.totalorder %s10, 1
        %s135 = scalar_select %p134, %s10, 1
        %s136 = smul.addr %s135, 8
        %s137 = scalar_lea.vmem %s0, %s136
      $region24: #{basicblock_forward.3} parent=19 // pred_fallthru
        _
    $region20: #{basicblock_forward.3} parent=5 // pred_fallthru
      _
    %p138 = scmp.le.s32.totalorder 1, %s10
    %p139 = scmp.lt.s32.totalorder %s10, 3
    %p140 = pnand %p138, %p139
    %p141 = pneg %p140
    // Predicated region
    $region25: #{basicblock_forward.3} parent=5 // pred_check
      _
    $region26: #{basicblock_forward.3} parent=5 // pred_check_branch
      %143 = sbr.rel (%p140) target = $region28
    $region27: #{basicblock_forward.3} parent=5 // pred_region
      %s144 = ssub.s32 %s10, 1
      %p145 = scmp.lt.s32.totalorder %s15, 1
      %s146 = scalar_select %p145, %s15, 1
      %s147 = smul.addr %s146, 8
      %s148 = scalar_lea.vmem %s0, %s147
      %p149 = pneg %p36
      %p150 = pneg %p33
      %p151 = pneg %p57
      %p152 = pneg %p54
      %p153 = pneg %p83
      %p154 = pneg %p80
      %p155 = scmp.lt.s32.totalorder %s15, 1
      %s156 = scalar_select %p155, %s15, 1
      %s157 = smul.addr %s156, 8
      %s158 = scalar_lea.vmem %s2, %s157
      %p159 = pneg %p109
      %p160 = pneg %p106
      %p161 = scmp.lt.s32.totalorder %s15, 1
      %s162 = scalar_select %p161, %s15, 1
      %s163 = smul.addr %s162, 2
      %s164 = scalar_lea.vmem %s3, %s163
      %p165 = scmp.lt.s32.totalorder %s15, 1
      %s166 = scalar_select %p165, %s15, 1
      %s167 = smul.addr %s166, 8
      %s168 = scalar_lea.vmem %s0, %s167
      %p169 = scmp.lt.s32.totalorder %s15, 1
      %s170 = scalar_select %p169, %s15, 1
      %s171 = smul.addr %s170, 8
      %s172 = scalar_lea.vmem %s2, %s171
      %p173 = scmp.lt.s32.totalorder %s15, 1
      %s174 = scalar_select %p173, %s15, 1
      %s175 = smul.addr %s174, 2
      %s176 = scalar_lea.vmem %s3, %s175
      %v177 = vld [vmem:[%s168] sm:$0xff]
      %178 = vst [vmem:[#allocation2] sm:$0x1] 0.0
      %179 = vst [vmem:[#allocation2 + $0x9] sm:$0x1] 0.0
      %180 = vst [vmem:[#allocation2 + $0x1] sm:$0xff] %v177
      %v181 = vld [vmem:[#allocation2] sm:$0xff]
      %v182 = vld [vmem:[%s1] sm:$0xff]
      %v183 = vld [vmem:[%s1 + $0x8] sm:$0xff]
      %v184 = vld [vmem:[%s1 + $0x10] sm:$0xff]
      %v185 = vld [vmem:[%s1 + $0x18] sm:$0xff]
      %v186 = vld [vmem:[%s1 + $0x20] sm:$0xff]
      %v187 = vld [vmem:[%s1 + $0x28] sm:$0xff]
      %v188 = vld [vmem:[%s1 + $0x30] sm:$0xff]
      %v189 = vld [vmem:[%s1 + $0x38] sm:$0xff]
      %v190 = vld [vmem:[%s1 + $0x40] sm:$0xff]
      %v191 = vld [vmem:[%s1 + $0x48] sm:$0xff]
      %v192 = vld [vmem:[%s1 + $0x50] sm:$0xff]
      %v193 = vld [vmem:[%s1 + $0x58] sm:$0xff]
      %v194 = vld [vmem:[%s1 + $0x60] sm:$0xff]
      %v195 = vld [vmem:[%s1 + $0x68] sm:$0xff]
      %v196 = vld [vmem:[%s1 + $0x70] sm:$0xff]
      %v197 = vld [vmem:[%s1 + $0x78] sm:$0xff]
      %v198 = vld [vmem:[#allocation2 + $0x1] sm:$0xff]
      %s199 = scalar_lea.vmem %s1, 128
      %v200 = vld [vmem:[%s199] sm:$0xff]
      %v201 = vld [vmem:[%s199 + $0x8] sm:$0xff]
      %v202 = vld [vmem:[%s199 + $0x10] sm:$0xff]
      %v203 = vld [vmem:[%s199 + $0x18] sm:$0xff]
      %v204 = vld [vmem:[%s199 + $0x20] sm:$0xff]
      %v205 = vld [vmem:[%s199 + $0x28] sm:$0xff]
      %v206 = vld [vmem:[%s199 + $0x30] sm:$0xff]
      %v207 = vld [vmem:[%s199 + $0x38] sm:$0xff]
      %v208 = vld [vmem:[%s199 + $0x40] sm:$0xff]
      %v209 = vld [vmem:[%s199 + $0x48] sm:$0xff]
      %v210 = vld [vmem:[%s199 + $0x50] sm:$0xff]
      %v211 = vld [vmem:[%s199 + $0x58] sm:$0xff]
      %v212 = vld [vmem:[%s199 + $0x60] sm:$0xff]
      %v213 = vld [vmem:[%s199 + $0x68] sm:$0xff]
      %v214 = vld [vmem:[%s199 + $0x70] sm:$0xff]
      %v215 = vld [vmem:[%s199 + $0x78] sm:$0xff]
      %216 = vmatprep.subr.mxu0 0.0
      %217 = vmatpush1.msra.mxu0 %v200
      %218 = vmatprep.subr.mxu0 0.0
      %219 = vmatpush1.msra.mxu0 %v201
      %220 = vmatprep.subr.mxu0 0.0
      %221 = vmatpush1.msra.mxu0 %v202
      %222 = vmatprep.subr.mxu0 0.0
      %223 = vmatpush1.msra.mxu0 %v203
      %224 = vmatprep.subr.mxu0 0.0
      %225 = vmatpush1.msra.mxu0 %v204
      %226 = vmatprep.subr.mxu0 0.0
      %227 = vmatpush1.msra.mxu0 %v205
      %228 = vmatprep.subr.mxu0 0.0
      %229 = vmatpush1.msra.mxu0 %v206
      %230 = vmatprep.subr.mxu0 0.0
      %231 = vmatpush1.msra.mxu0 %v207
      %232 = vmatprep.subr.mxu0 0.0
      %233 = vmatpush1.msra.mxu0 %v208
      %234 = vmatprep.subr.mxu0 0.0
      %235 = vmatpush1.msra.mxu0 %v209
      %236 = vmatprep.subr.mxu0 0.0
      %237 = vmatpush1.msra.mxu0 %v210
      %238 = vmatprep.subr.mxu0 0.0
      %239 = vmatpush1.msra.mxu0 %v211
      %240 = vmatprep.subr.mxu0 0.0
      %241 = vmatpush1.msra.mxu0 %v212
      %242 = vmatprep.subr.mxu0 0.0
      %243 = vmatpush1.msra.mxu0 %v213
      %244 = vmatprep.subr.mxu0 0.0
      %245 = vmatpush1.msra.mxu0 %v214
      %246 = vmatprep.subr.mxu0 0.0
      %247 = vmatpush1.msra.mxu0 %v215
      %248 = vmatprep.subr.mxu0 0.0
      %249 = vmatpush1.msra.mxu0 0.0
      %250 = vmatprep.subr.mxu0 0.0
      %251 = vmatpush1.msra.mxu0 0.0
      %252 = vmatprep.subr.mxu0 0.0
      %253 = vmatpush1.msra.mxu0 0.0
      %254 = vmatprep.subr.mxu0 0.0
      %255 = vmatpush1.msra.mxu0 0.0
      %256 = vmatprep.subr.mxu0 0.0
      %257 = vmatpush1.msra.mxu0 0.0
      %258 = vmatprep.subr.mxu0 0.0
      %259 = vmatpush1.msra.mxu0 0.0
      %260 = vmatprep.subr.mxu0 0.0
      %261 = vmatpush1.msra.mxu0 0.0
      %262 = vmatprep.subr.mxu0 0.0
      %263 = vmatpush1.msra.mxu0 0.0
      %264 = vmatprep.subr.mxu0 0.0
      %265 = vmatpush1.msra.mxu0 0.0
      %266 = vmatprep.subr.mxu0 0.0
      %267 = vmatpush1.msra.mxu0 0.0
      %268 = vmatprep.subr.mxu0 0.0
      %269 = vmatpush1.msra.mxu0 0.0
      %270 = vmatprep.subr.mxu0 0.0
      %271 = vmatpush1.msra.mxu0 0.0
      %272 = vmatprep.subr.mxu0 0.0
      %273 = vmatpush1.msra.mxu0 0.0
      %274 = vmatprep.subr.mxu0 0.0
      %275 = vmatpush1.msra.mxu0 0.0
      %276 = vmatprep.subr.mxu0 0.0
      %277 = vmatpush1.msra.mxu0 0.0
      %278 = vmatprep.subr.mxu0 0.0
      %279 = vmatpush1.msra.mxu0 0.0
      %280 = vmatprep.mubr.f32.mxu0 0.0
      %281 = vmatmul.mubr.f32.gmra.mrb[0].mxu0 %v198
      %v282 = vpop.f32.mrb[0].mxu0
      %v283 = vadd.f32 0.0, %v282
      %v284 = vpop.f32.mrb[0].mxu0
      %285 = vdwg.mxu0
      %286 = vmatprep.subr.mxu0 0.0
      %287 = vmatpush1.msra.mxu0 %v182
      %288 = vmatprep.subr.mxu0 0.0
      %289 = vmatpush1.msra.mxu0 %v183
      %290 = vmatprep.subr.mxu0 0.0
      %291 = vmatpush1.msra.mxu0 %v184
      %292 = vmatprep.subr.mxu0 0.0
      %293 = vmatpush1.msra.mxu0 %v185
      %294 = vmatprep.subr.mxu0 0.0
      %295 = vmatpush1.msra.mxu0 %v186
      %296 = vmatprep.subr.mxu0 0.0
      %297 = vmatpush1.msra.mxu0 %v187
      %298 = vmatprep.subr.mxu0 0.0
      %299 = vmatpush1.msra.mxu0 %v188
      %300 = vmatprep.subr.mxu0 0.0
      %301 = vmatpush1.msra.mxu0 %v189
      %302 = vmatprep.subr.mxu0 0.0
      %303 = vmatpush1.msra.mxu0 %v190
      %304 = vmatprep.subr.mxu0 0.0
      %305 = vmatpush1.msra.mxu0 %v191
      %306 = vmatprep.subr.mxu0 0.0
      %307 = vmatpush1.msra.mxu0 %v192
      %308 = vmatprep.subr.mxu0 0.0
      %309 = vmatpush1.msra.mxu0 %v193
      %310 = vmatprep.subr.mxu0 0.0
      %311 = vmatpush1.msra.mxu0 %v194
      %312 = vmatprep.subr.mxu0 0.0
      %313 = vmatpush1.msra.mxu0 %v195
      %314 = vmatprep.subr.mxu0 0.0
      %315 = vmatpush1.msra.mxu0 %v196
      %316 = vmatprep.subr.mxu0 0.0
      %317 = vmatpush1.msra.mxu0 %v197
      %318 = vmatprep.subr.mxu0 0.0
      %319 = vmatpush1.msra.mxu0 0.0
      %320 = vmatprep.subr.mxu0 0.0
      %321 = vmatpush1.msra.mxu0 0.0
      %322 = vmatprep.subr.mxu0 0.0
      %323 = vmatpush1.msra.mxu0 0.0
      %324 = vmatprep.subr.mxu0 0.0
      %325 = vmatpush1.msra.mxu0 0.0
      %326 = vmatprep.subr.mxu0 0.0
      %327 = vmatpush1.msra.mxu0 0.0
      %328 = vmatprep.subr.mxu0 0.0
      %329 = vmatpush1.msra.mxu0 0.0
      %330 = vmatprep.subr.mxu0 0.0
      %331 = vmatpush1.msra.mxu0 0.0
      %332 = vmatprep.subr.mxu0 0.0
      %333 = vmatpush1.msra.mxu0 0.0
      %334 = vmatprep.subr.mxu0 0.0
      %335 = vmatpush1.msra.mxu0 0.0
      %336 = vmatprep.subr.mxu0 0.0
      %337 = vmatpush1.msra.mxu0 0.0
      %338 = vmatprep.subr.mxu0 0.0
      %339 = vmatpush1.msra.mxu0 0.0
      %340 = vmatprep.subr.mxu0 0.0
      %341 = vmatpush1.msra.mxu0 0.0
      %342 = vmatprep.subr.mxu0 0.0
      %343 = vmatpush1.msra.mxu0 0.0
      %344 = vmatprep.subr.mxu0 0.0
      %345 = vmatpush1.msra.mxu0 0.0
      %346 = vmatprep.subr.mxu0 0.0
      %347 = vmatpush1.msra.mxu0 0.0
      %348 = vmatprep.subr.mxu0 0.0
      %349 = vmatpush1.msra.mxu0 0.0
      %350 = vmatprep.mubr.f32.mxu0 0.0
      %351 = vmatmul.mubr.f32.gmra.mrb[0].mxu0 %v181
      %v352 = vpop.f32.mrb[0].mxu0
      %v353 = vadd.f32 %v283, %v352
      %v354 = vpop.f32.mrb[0].mxu0
      %355 = vdwg.mxu0
      %v356 = vld [vmem:[#allocation2 + $0x2] sm:$0xff]
      %s357 = scalar_lea.vmem %s1, 256
      %v358 = vld [vmem:[%s357] sm:$0xff]
      %v359 = vld [vmem:[%s357 + $0x8] sm:$0xff]
      %v360 = vld [vmem:[%s357 + $0x10] sm:$0xff]
      %v361 = vld [vmem:[%s357 + $0x18] sm:$0xff]
      %v362 = vld [vmem:[%s357 + $0x20] sm:$0xff]
      %v363 = vld [vmem:[%s357 + $0x28] sm:$0xff]
      %v364 = vld [vmem:[%s357 + $0x30] sm:$0xff]
      %v365 = vld [vmem:[%s357 + $0x38] sm:$0xff]
      %v366 = vld [vmem:[%s357 + $0x40] sm:$0xff]
      %v367 = vld [vmem:[%s357 + $0x48] sm:$0xff]
      %v368 = vld [vmem:[%s357 + $0x50] sm:$0xff]
      %v369 = vld [vmem:[%s357 + $0x58] sm:$0xff]
      %v370 = vld [vmem:[%s357 + $0x60] sm:$0xff]
      %v371 = vld [vmem:[%s357 + $0x68] sm:$0xff]
      %v372 = vld [vmem:[%s357 + $0x70] sm:$0xff]
      %v373 = vld [vmem:[%s357 + $0x78] sm:$0xff]
      %374 = vmatprep.subr.mxu0 0.0
      %375 = vmatpush1.msra.mxu0 %v358
      %376 = vmatprep.subr.mxu0 0.0
      %377 = vmatpush1.msra.mxu0 %v359
      %378 = vmatprep.subr.mxu0 0.0
      %379 = vmatpush1.msra.mxu0 %v360
      %380 = vmatprep.subr.mxu0 0.0
      %381 = vmatpush1.msra.mxu0 %v361
      %382 = vmatprep.subr.mxu0 0.0
      %383 = vmatpush1.msra.mxu0 %v362
      %384 = vmatprep.subr.mxu0 0.0
      %385 = vmatpush1.msra.mxu0 %v363
      %386 = vmatprep.subr.mxu0 0.0
      %387 = vmatpush1.msra.mxu0 %v364
      %388 = vmatprep.subr.mxu0 0.0
      %389 = vmatpush1.msra.mxu0 %v365
      %390 = vmatprep.subr.mxu0 0.0
      %391 = vmatpush1.msra.mxu0 %v366
      %392 = vmatprep.subr.mxu0 0.0
      %393 = vmatpush1.msra.mxu0 %v367
      %394 = vmatprep.subr.mxu0 0.0
      %395 = vmatpush1.msra.mxu0 %v368
      %396 = vmatprep.subr.mxu0 0.0
      %397 = vmatpush1.msra.mxu0 %v369
      %398 = vmatprep.subr.mxu0 0.0
      %399 = vmatpush1.msra.mxu0 %v370
      %400 = vmatprep.subr.mxu0 0.0
      %401 = vmatpush1.msra.mxu0 %v371
      %402 = vmatprep.subr.mxu0 0.0
      %403 = vmatpush1.msra.mxu0 %v372
      %404 = vmatprep.subr.mxu0 0.0
      %405 = vmatpush1.msra.mxu0 %v373
      %406 = vmatprep.subr.mxu0 0.0
      %407 = vmatpush1.msra.mxu0 0.0
      %408 = vmatprep.subr.mxu0 0.0
      %409 = vmatpush1.msra.mxu0 0.0
      %410 = vmatprep.subr.mxu0 0.0
      %411 = vmatpush1.msra.mxu0 0.0
      %412 = vmatprep.subr.mxu0 0.0
      %413 = vmatpush1.msra.mxu0 0.0
      %414 = vmatprep.subr.mxu0 0.0
      %415 = vmatpush1.msra.mxu0 0.0
      %416 = vmatprep.subr.mxu0 0.0
      %417 = vmatpush1.msra.mxu0 0.0
      %418 = vmatprep.subr.mxu0 0.0
      %419 = vmatpush1.msra.mxu0 0.0
      %420 = vmatprep.subr.mxu0 0.0
      %421 = vmatpush1.msra.mxu0 0.0
      %422 = vmatprep.subr.mxu0 0.0
      %423 = vmatpush1.msra.mxu0 0.0
      %424 = vmatprep.subr.mxu0 0.0
      %425 = vmatpush1.msra.mxu0 0.0
      %426 = vmatprep.subr.mxu0 0.0
      %427 = vmatpush1.msra.mxu0 0.0
      %428 = vmatprep.subr.mxu0 0.0
      %429 = vmatpush1.msra.mxu0 0.0
      %430 = vmatprep.subr.mxu0 0.0
      %431 = vmatpush1.msra.mxu0 0.0
      %432 = vmatprep.subr.mxu0 0.0
      %433 = vmatpush1.msra.mxu0 0.0
      %434 = vmatprep.subr.mxu0 0.0
      %435 = vmatpush1.msra.mxu0 0.0
      %436 = vmatprep.subr.mxu0 0.0
      %437 = vmatpush1.msra.mxu0 0.0
      %438 = vmatprep.mubr.f32.mxu0 0.0
      %439 = vmatmul.mubr.f32.gmra.mrb[0].mxu0 %v356
      %v440 = vpop.f32.mrb[0].mxu0
      %v441 = vadd.f32 0.0, %v440
      %v442 = vpop.f32.mrb[0].mxu0
      %443 = vdwg.mxu0
      %v444 = vadd.f32 %v353, %v441
      %445 = vst [vmem:[%s172] sm:$0xff] %v444
      %vm446 = vcmask 64512
      %v448 = vsel %vm446, 1.0, 0
      %450 = vmatprep.subr.mxu0 0.0
      %451 = vmatpush1.msra.mxu0 %v444
      %452 = vmatprep.subr.mxu0 0.0
      %453 = vmatpush1.msra.mxu0 0.0
      %454 = vmatprep.subr.mxu0 0.0
      %455 = vmatpush1.msra.mxu0 0.0
      %456 = vmatprep.subr.mxu0 0.0
      %457 = vmatpush1.msra.mxu0 0.0
      %458 = vmatprep.subr.mxu0 0.0
      %459 = vmatpush1.msra.mxu0 0.0
      %460 = vmatprep.subr.mxu0 0.0
      %461 = vmatpush1.msra.mxu0 0.0
      %462 = vmatprep.subr.mxu0 0.0
      %463 = vmatpush1.msra.mxu0 0.0
      %464 = vmatprep.subr.mxu0 0.0
      %465 = vmatpush1.msra.mxu0 0.0
      %466 = vmatprep.subr.mxu0 0.0
      %467 = vmatpush1.msra.mxu0 0.0
      %468 = vmatprep.subr.mxu0 0.0
      %469 = vmatpush1.msra.mxu0 0.0
      %470 = vmatprep.subr.mxu0 0.0
      %471 = vmatpush1.msra.mxu0 0.0
      %472 = vmatprep.subr.mxu0 0.0
      %473 = vmatpush1.msra.mxu0 0.0
      %474 = vmatprep.subr.mxu0 0.0
      %475 = vmatpush1.msra.mxu0 0.0
      %476 = vmatprep.subr.mxu0 0.0
      %477 = vmatpush1.msra.mxu0 0.0
      %478 = vmatprep.subr.mxu0 0.0
      %479 = vmatpush1.msra.mxu0 0.0
      %480 = vmatprep.subr.mxu0 0.0
      %481 = vmatpush1.msra.mxu0 0.0
      %482 = vmatprep.subr.mxu0 0.0
      %483 = vmatpush1.msra.mxu0 0.0
      %484 = vmatprep.subr.mxu0 0.0
      %485 = vmatpush1.msra.mxu0 0.0
      %486 = vmatprep.subr.mxu0 0.0
      %487 = vmatpush1.msra.mxu0 0.0
      %488 = vmatprep.subr.mxu0 0.0
      %489 = vmatpush1.msra.mxu0 0.0
      %490 = vmatprep.subr.mxu0 0.0
      %491 = vmatpush1.msra.mxu0 0.0
      %492 = vmatprep.subr.mxu0 0.0
      %493 = vmatpush1.msra.mxu0 0.0
      %494 = vmatprep.subr.mxu0 0.0
      %495 = vmatpush1.msra.mxu0 0.0
      %496 = vmatprep.subr.mxu0 0.0
      %497 = vmatpush1.msra.mxu0 0.0
      %498 = vmatprep.subr.mxu0 0.0
      %499 = vmatpush1.msra.mxu0 0.0
      %500 = vmatprep.subr.mxu0 0.0
      %501 = vmatpush1.msra.mxu0 0.0
      %502 = vmatprep.subr.mxu0 0.0
      %503 = vmatpush1.msra.mxu0 0.0
      %504 = vmatprep.subr.mxu0 0.0
      %505 = vmatpush1.msra.mxu0 0.0
      %506 = vmatprep.subr.mxu0 0.0
      %507 = vmatpush1.msra.mxu0 0.0
      %508 = vmatprep.subr.mxu0 0.0
      %509 = vmatpush1.msra.mxu0 0.0
      %510 = vmatprep.subr.mxu0 0.0
      %511 = vmatpush1.msra.mxu0 0.0
      %512 = vmatprep.subr.mxu0 0.0
      %513 = vmatpush1.msra.mxu0 0.0
      %514 = vmatprep.mubr.f32.mxu0 0.0
      %515 = vmatmul.mubr.f32.gmra.mrb[0].mxu0 %v448
      %v516 = vpop.f32.mrb[0].mxu0
      %v517 = vadd.f32 0.0, %v516
      %v518 = vpop.f32.mrb[0].mxu0
      %519 = vdwg.mxu0
      %v520 = vmul.f32 %v444, %v444
      %521 = vmatprep.subr.mxu0 0.0
      %522 = vmatpush1.msra.mxu0 %v520
      %523 = vmatprep.subr.mxu0 0.0
      %524 = vmatpush1.msra.mxu0 0.0
      %525 = vmatprep.subr.mxu0 0.0
      %526 = vmatpush1.msra.mxu0 0.0
      %527 = vmatprep.subr.mxu0 0.0
      %528 = vmatpush1.msra.mxu0 0.0
      %529 = vmatprep.subr.mxu0 0.0
      %530 = vmatpush1.msra.mxu0 0.0
      %531 = vmatprep.subr.mxu0 0.0
      %532 = vmatpush1.msra.mxu0 0.0
      %533 = vmatprep.subr.mxu0 0.0
      %534 = vmatpush1.msra.mxu0 0.0
      %535 = vmatprep.subr.mxu0 0.0
      %536 = vmatpush1.msra.mxu0 0.0
      %537 = vmatprep.subr.mxu0 0.0
      %538 = vmatpush1.msra.mxu0 0.0
      %539 = vmatprep.subr.mxu0 0.0
      %540 = vmatpush1.msra.mxu0 0.0
      %541 = vmatprep.subr.mxu0 0.0
      %542 = vmatpush1.msra.mxu0 0.0
      %543 = vmatprep.subr.mxu0 0.0
      %544 = vmatpush1.msra.mxu0 0.0
      %545 = vmatprep.subr.mxu0 0.0
      %546 = vmatpush1.msra.mxu0 0.0
      %547 = vmatprep.subr.mxu0 0.0
      %548 = vmatpush1.msra.mxu0 0.0
      %549 = vmatprep.subr.mxu0 0.0
      %550 = vmatpush1.msra.mxu0 0.0
      %551 = vmatprep.subr.mxu0 0.0
      %552 = vmatpush1.msra.mxu0 0.0
      %553 = vmatprep.subr.mxu0 0.0
      %554 = vmatpush1.msra.mxu0 0.0
      %555 = vmatprep.subr.mxu0 0.0
      %556 = vmatpush1.msra.mxu0 0.0
      %557 = vmatprep.subr.mxu0 0.0
      %558 = vmatpush1.msra.mxu0 0.0
      %559 = vmatprep.subr.mxu0 0.0
      %560 = vmatpush1.msra.mxu0 0.0
      %561 = vmatprep.subr.mxu0 0.0
      %562 = vmatpush1.msra.mxu0 0.0
      %563 = vmatprep.subr.mxu0 0.0
      %564 = vmatpush1.msra.mxu0 0.0
      %565 = vmatprep.subr.mxu0 0.0
      %566 = vmatpush1.msra.mxu0 0.0
      %567 = vmatprep.subr.mxu0 0.0
      %568 = vmatpush1.msra.mxu0 0.0
      %569 = vmatprep.subr.mxu0 0.0
      %570 = vmatpush1.msra.mxu0 0.0
      %571 = vmatprep.subr.mxu0 0.0
      %572 = vmatpush1.msra.mxu0 0.0
      %573 = vmatprep.subr.mxu0 0.0
      %574 = vmatpush1.msra.mxu0 0.0
      %575 = vmatprep.subr.mxu0 0.0
      %576 = vmatpush1.msra.mxu0 0.0
      %577 = vmatprep.subr.mxu0 0.0
      %578 = vmatpush1.msra.mxu0 0.0
      %579 = vmatprep.subr.mxu0 0.0
      %580 = vmatpush1.msra.mxu0 0.0
      %581 = vmatprep.subr.mxu0 0.0
      %582 = vmatpush1.msra.mxu0 0.0
      %583 = vmatprep.subr.mxu0 0.0
      %584 = vmatpush1.msra.mxu0 0.0
      %585 = vmatprep.mubr.f32.mxu0 0.0
      %586 = vmatmul.mubr.f32.gmra.mrb[0].mxu0 %v448
      %v587 = vpop.f32.mrb[0].mxu0
      %v588 = vadd.f32 0.0, %v587
      %v589 = vpop.f32.mrb[0].mxu0
      %590 = vdwg.mxu0
      %v592 = vrot.slane %v588, 7
      %vm594 = vcmask 1040384
      %v595 = vsel %vm594, %v517, %v592
      %596 = vst [vmem:[%s176] sm:$0x3] %v595
      %p597 = scmp.lt.s32.totalorder %s15, 1
      %s598 = scalar_select %p597, %s15, 1
      %s599 = smul.addr %s598, 8
      %s600 = scalar_lea.vmem %s2, %s599
      %p601 = scmp.lt.s32.totalorder %s15, 1
      %s602 = scalar_select %p601, %s15, 1
      %s603 = smul.addr %s602, 2
      %s604 = scalar_lea.vmem %s3, %s603
      // Predicated region
      $region29: #{basicblock_forward.3} parent=27 // pred_check
        %p605 = pneg %p80
      $region30: #{basicblock_forward.3} parent=27 // pred_check_branch
        %607 = sbr.rel (%p605) target = $region32
      $region31: #{basicblock_forward.3} parent=27 // pred_region
        _
      $region32: #{basicblock_forward.3} parent=27 // pred_fallthru
        _
      // Predicated region
      $region33: #{basicblock_forward.3} parent=27 // pred_check
        %p608 = pneg %p106
      $region34: #{basicblock_forward.3} parent=27 // pred_check_branch
        %610 = sbr.rel (%p608) target = $region36
      $region35: #{basicblock_forward.3} parent=27 // pred_region
        _
      $region36: #{basicblock_forward.3} parent=27 // pred_fallthru
        _
    $region28: #{basicblock_forward.3} parent=5 // pred_fallthru
      _
    %p611 = scmp.le.s32.totalorder 2, %s10
    // Predicated region
    $region37: #{basicblock_forward.3} parent=5 // pred_check
      %p612 = pneg %p611
    $region38: #{basicblock_forward.3} parent=5 // pred_check_branch
      %614 = sbr.rel (%p612) target = $region40
    $region39: #{basicblock_forward.3} parent=5 // pred_region
      %s615 = ssub.s32 %s10, 2
      // Predicated region
      $region41: #{basicblock_forward.3} parent=39 // pred_check
        %p616 = pneg %p86
      $region42: #{basicblock_forward.3} parent=39 // pred_check_branch
        %618 = sbr.rel (%p616) target = $region44
      $region43: #{basicblock_forward.3} parent=39 // pred_region
        %p619 = scmp.lt.s32.totalorder %s16, 1
        %s620 = scalar_select %p619, %s16, 1
        %s621 = smul.addr %s620, 8
        %s622 = scalar_lea.vmem %s2, %s621
      $region44: #{basicblock_forward.3} parent=39 // pred_fallthru
        _
      // Predicated region
      $region45: #{basicblock_forward.3} parent=39 // pred_check
        %p623 = pneg %p112
      $region46: #{basicblock_forward.3} parent=39 // pred_check_branch
        %625 = sbr.rel (%p623) target = $region48
      $region47: #{basicblock_forward.3} parent=39 // pred_region
        %p626 = scmp.lt.s32.totalorder %s16, 1
        %s627 = scalar_select %p626, %s16, 1
        %s628 = smul.addr %s627, 2
        %s629 = scalar_lea.vmem %s3, %s628
      $region48: #{basicblock_forward.3} parent=39 // pred_fallthru
        _
    $region40: #{basicblock_forward.3} parent=5 // pred_fallthru
      _
  $region6: #{basicblock_forward.3} parent=0 // loop_footer
    %s14 = sadd.s32 1, %s10
  $region7: #{basicblock_forward.3} parent=0 // loop_footer_branch
    %9 = sbr.rel target = $region3
  $region8: #{basicblock_forward.3} parent=0 // loop_exit
    _

// kernel: basicblock_forward.4
$region0: #{basicblock_forward.4}
  #allocation0 [shape = 'u32[]', space=smem, size = 0x4, offset = 0x4, fixed_abs, tag = 'smem constant byte address 0x4 - core index']
  #allocation1 [shape = 'u32[144,128]{1,0:T(1,128)}', space=vmem, size = 0x12000, scoped, tag = 'internal scratch']
  #allocation2 [shape = 'f32[1,10,128]{2,1,0:T(8,128)}', space=vmem, size = 0x2000, scoped, tag = 'scratch operand']
  %s0 = inlined_call_operand.vmem [shape: f32[16,128], index: 0, kind: input, shape index: {}]
  %s1 = inlined_call_operand.vmem [shape: f32[1,128], index: 1, kind: input, shape index: {}]
  %s2 = inlined_call_operand.vmem [shape: f32[1,128], index: 2, kind: input, shape index: {}]
  %s3 = inlined_call_operand.vmem [shape: f32[3,128,128], index: 3, kind: input, shape index: {}]
  %s4 = inlined_call_operand.vmem [shape: f32[16,128], index: 4, kind: output, shape index: {0}]
  %s5 = inlined_call_operand.vmem [shape: f32[2,2,128], index: 5, kind: output, shape index: {1}]
  %6 = xla_tuple %s4, %s5
  %s7 = sld [smem:[#allocation0]]
  $region57: #{basicblock_forward.4} parent=0
    _
  %s9 = ssub.s32 1, %s7
  %s10 = scalar_select 0, %s9, %s7
  loop: start=0, step=1, limit=4
  $region2: #{basicblock_forward.4} parent=0 // loop_pre_header
    _
  $region3: #{basicblock_forward.4} parent=0 // loop_header
    %s12 = sphi 0, %s16
    %p13 = scmp.ge.s32.totalorder %s12, 4
    %s22 = sphi 0, %s24
    %s25 = sphi 0, %s22
    %s26 = sphi 0, %s25
    %s42 = sphi 0, %s26
    %s46 = sphi 0, %s46
    %s48 = sphi 0, %s46
    %s49 = sphi 0, %s48
    %s63 = sphi 0, %s49
    %s67 = sphi 0, %s67
    %s69 = sphi 0, %s67
    %s70 = sphi 0, %s69
    %s84 = sphi 0, %s70
    %s88 = sphi 0, %s88
    %s90 = sphi 0, %s88
    %s91 = sphi 0, %s90
    %s105 = sphi 0, %s91
    %s111 = sphi 0, %s113
    %s114 = sphi 0, %s111
    %s115 = sphi 0, %s114
    %s131 = sphi 0, %s115
    %s137 = sphi 0, %s139
    %s140 = sphi 0, %s137
    %s141 = sphi 0, %s140
    %s157 = sphi 0, %s141
  $region4: #{basicblock_forward.4} parent=0 // loop_header_branch
    %15 = sbr.rel (%p13) target = $region8
  $region5: #{basicblock_forward.4} parent=0 // loop_body
    %s17 = ssub.s32 %s12, 1
    %s18 = ssub.s32 %s12, 2
    %s19 = sadd.s32 %s12, 1
    %s20 = ssub.s32 %s12, %s19
    %p21 = scmp.eq.s32.totalorder %s20, 0
    %s23 = sadd.s32 %s22, 1
    %s24 = scalar_select %p21, %s22, %s23
    %p27 = pneg %p21
    %p28 = scmp.eq.s32.totalorder %s12, 1
    %p29 = por %p27, %p28
    %p30 = scmp.ne.s32.totalorder %s22, %s25
    %p31 = scmp.eq.s32.totalorder %s12, 0
    %p32 = por %p30, %p31
    %p33 = scmp.ne.s32.totalorder %s22, %s25
    %p34 = scmp.eq.s32.totalorder %s17, 1
    %p35 = por %p33, %p34
    %p36 = scmp.ne.s32.totalorder %s25, %s26
    %p37 = scmp.eq.s32.totalorder %s17, 0
    %p38 = por %p36, %p37
    %p39 = scmp.ne.s32.totalorder %s25, %s26
    %p40 = scmp.eq.s32.totalorder %s18, 1
    %p41 = por %p39, %p40
    %p43 = scmp.ne.s32.totalorder %s26, %s42
    %p44 = scmp.eq.s32.totalorder %s18, 0
    %p45 = por %p43, %p44
    %s47 = sadd.s32 %s46, 1
    %p50 = scmp.eq.s32.totalorder %s12, 1
    %p51 = scmp.ne.s32.totalorder %s46, %s48
    %p52 = scmp.eq.s32.totalorder %s12, 0
    %p53 = por %p51, %p52
    %p54 = scmp.ne.s32.totalorder %s46, %s48
    %p55 = scmp.eq.s32.totalorder %s17, 1
    %p56 = por %p54, %p55
    %p57 = scmp.ne.s32.totalorder %s48, %s49
    %p58 = scmp.eq.s32.totalorder %s17, 0
    %p59 = por %p57, %p58
    %p60 = scmp.ne.s32.totalorder %s48, %s49
    %p61 = scmp.eq.s32.totalorder %s18, 1
    %p62 = por %p60, %p61
    %p64 = scmp.ne.s32.totalorder %s49, %s63
    %p65 = scmp.eq.s32.totalorder %s18, 0
    %p66 = por %p64, %p65
    %s68 = sadd.s32 %s67, 1
    %p71 = scmp.eq.s32.totalorder %s12, 1
    %p72 = scmp.ne.s32.totalorder %s67, %s69
    %p73 = scmp.eq.s32.totalorder %s12, 0
    %p74 = por %p72, %p73
    %p75 = scmp.ne.s32.totalorder %s67, %s69
    %p76 = scmp.eq.s32.totalorder %s17, 1
    %p77 = por %p75, %p76
    %p78 = scmp.ne.s32.totalorder %s69, %s70
    %p79 = scmp.eq.s32.totalorder %s17, 0
    %p80 = por %p78, %p79
    %p81 = scmp.ne.s32.totalorder %s69, %s70
    %p82 = scmp.eq.s32.totalorder %s18, 1
    %p83 = por %p81, %p82
    %p85 = scmp.ne.s32.totalorder %s70, %s84
    %p86 = scmp.eq.s32.totalorder %s18, 0
    %p87 = por %p85, %p86
    %s89 = sadd.s32 %s88, 1
    %p92 = scmp.eq.s32.totalorder %s12, 1
    %p93 = scmp.ne.s32.totalorder %s88, %s90
    %p94 = scmp.eq.s32.totalorder %s12, 0
    %p95 = por %p93, %p94
    %p96 = scmp.ne.s32.totalorder %s88, %s90
    %p97 = scmp.eq.s32.totalorder %s17, 1
    %p98 = por %p96, %p97
    %p99 = scmp.ne.s32.totalorder %s90, %s91
    %p100 = scmp.eq.s32.totalorder %s17, 0
    %p101 = por %p99, %p100
    %p102 = scmp.ne.s32.totalorder %s90, %s91
    %p103 = scmp.eq.s32.totalorder %s18, 1
    %p104 = por %p102, %p103
    %p106 = scmp.ne.s32.totalorder %s91, %s105
    %p107 = scmp.eq.s32.totalorder %s18, 0
    %p108 = por %p106, %p107
    %s109 = ssub.s32 %s12, %s19
    %p110 = scmp.eq.s32.totalorder %s109, 0
    %s112 = sadd.s32 %s111, 1
    %s113 = scalar_select %p110, %s111, %s112
    %p116 = pneg %p110
    %p117 = scmp.eq.s32.totalorder %s12, 1
    %p118 = por %p116, %p117
    %p119 = scmp.ne.s32.totalorder %s111, %s114
    %p120 = scmp.eq.s32.totalorder %s12, 0
    %p121 = por %p119, %p120
    %p122 = scmp.ne.s32.totalorder %s111, %s114
    %p123 = scmp.eq.s32.totalorder %s17, 1
    %p124 = por %p122, %p123
    %p125 = scmp.ne.s32.totalorder %s114, %s115
    %p126 = scmp.eq.s32.totalorder %s17, 0
    %p127 = por %p125, %p126
    %p128 = scmp.ne.s32.totalorder %s114, %s115
    %p129 = scmp.eq.s32.totalorder %s18, 1
    %p130 = por %p128, %p129
    %p132 = scmp.ne.s32.totalorder %s115, %s131
    %p133 = scmp.eq.s32.totalorder %s18, 0
    %p134 = por %p132, %p133
    %s135 = ssub.s32 %s12, %s19
    %p136 = scmp.eq.s32.totalorder %s135, 0
    %s138 = sadd.s32 %s137, 1
    %s139 = scalar_select %p136, %s137, %s138
    %p142 = pneg %p136
    %p143 = scmp.eq.s32.totalorder %s12, 1
    %p144 = por %p142, %p143
    %p145 = scmp.ne.s32.totalorder %s137, %s140
    %p146 = scmp.eq.s32.totalorder %s12, 0
    %p147 = por %p145, %p146
    %p148 = scmp.ne.s32.totalorder %s137, %s140
    %p149 = scmp.eq.s32.totalorder %s17, 1
    %p150 = por %p148, %p149
    %p151 = scmp.ne.s32.totalorder %s140, %s141
    %p152 = scmp.eq.s32.totalorder %s17, 0
    %p153 = por %p151, %p152
    %p154 = scmp.ne.s32.totalorder %s140, %s141
    %p155 = scmp.eq.s32.totalorder %s18, 1
    %p156 = por %p154, %p155
    %p158 = scmp.ne.s32.totalorder %s141, %s157
    %p159 = scmp.eq.s32.totalorder %s18, 0
    %p160 = por %p158, %p159
    %p161 = scmp.le.s32.totalorder 1, %s12
    %p162 = scmp.lt.s32.totalorder %s12, 3
    %p163 = pnand %p161, %p162
    %p164 = pneg %p163
    // Predicated region
    $region9: #{basicblock_forward.4} parent=5 // pred_check
      _
    $region10: #{basicblock_forward.4} parent=5 // pred_check_branch
      %166 = sbr.rel (%p163) target = $region12
    $region11: #{basicblock_forward.4} parent=5 // pred_region
      %s167 = ssub.s32 %s12, 1
      // Predicated region
      $region13: #{basicblock_forward.4} parent=11 // pred_check
        %p168 = pneg %p59
      $region14: #{basicblock_forward.4} parent=11 // pred_check_branch
        %170 = sbr.rel (%p168) target = $region16
      $region15: #{basicblock_forward.4} parent=11 // pred_region
        _
      $region16: #{basicblock_forward.4} parent=11 // pred_fallthru
        _
      // Predicated region
      $region17: #{basicblock_forward.4} parent=11 // pred_check
        %p171 = pneg %p80
      $region18: #{basicblock_forward.4} parent=11 // pred_check_branch
        %173 = sbr.rel (%p171) target = $region20
      $region19: #{basicblock_forward.4} parent=11 // pred_region
        _
      $region20: #{basicblock_forward.4} parent=11 // pred_fallthru
        _
      // Predicated region
      $region21: #{basicblock_forward.4} parent=11 // pred_check
        %p174 = pneg %p101
      $region22: #{basicblock_forward.4} parent=11 // pred_check_branch
        %176 = sbr.rel (%p174) target = $region24
      $region23: #{basicblock_forward.4} parent=11 // pred_region
        _
      $region24: #{basicblock_forward.4} parent=11 // pred_fallthru
        _
    $region12: #{basicblock_forward.4} parent=5 // pred_fallthru
      _
    %p177 = scmp.lt.s32.totalorder %s12, 2
    // Predicated region
    $region25: #{basicblock_forward.4} parent=5 // pred_check
      %p178 = pneg %p177
    $region26: #{basicblock_forward.4} parent=5 // pred_check_branch
      %180 = sbr.rel (%p178) target = $region28
    $region27: #{basicblock_forward.4} parent=5 // pred_region
      // Predicated region
      $region29: #{basicblock_forward.4} parent=27 // pred_check
        %p181 = pneg %p32
      $region30: #{basicblock_forward.4} parent=27 // pred_check_branch
        %183 = sbr.rel (%p181) target = $region32
      $region31: #{basicblock_forward.4} parent=27 // pred_region
        %p184 = scmp.lt.s32.totalorder %s12, 1
        %s185 = scalar_select %p184, %s12, 1
        %s186 = smul.addr %s185, 8
        %s187 = scalar_lea.vmem %s0, %s186
      $region32: #{basicblock_forward.4} parent=27 // pred_fallthru
        _
    $region28: #{basicblock_forward.4} parent=5 // pred_fallthru
      _
    %p188 = scmp.le.s32.totalorder 1, %s12
    %p189 = scmp.lt.s32.totalorder %s12, 3
    %p190 = pnand %p188, %p189
    %p191 = pneg %p190
    // Predicated region
    $region33: #{basicblock_forward.4} parent=5 // pred_check
      _
    $region34: #{basicblock_forward.4} parent=5 // pred_check_branch
      %193 = sbr.rel (%p190) target = $region36
    $region35: #{basicblock_forward.4} parent=5 // pred_region
      %s194 = ssub.s32 %s12, 1
      %p195 = scmp.lt.s32.totalorder %s17, 1
      %s196 = scalar_select %p195, %s17, 1
      %s197 = smul.addr %s196, 8
      %s198 = scalar_lea.vmem %s0, %s197
      %p199 = pneg %p38
      %p200 = pneg %p35
      %p201 = pneg %p59
      %p202 = pneg %p56
      %p203 = pneg %p80
      %p204 = pneg %p77
      %p205 = pneg %p101
      %p206 = pneg %p98
      %p207 = pneg %p127
      %p208 = pneg %p124
      %p209 = scmp.lt.s32.totalorder %s17, 1
      %s210 = scalar_select %p209, %s17, 1
      %s211 = smul.addr %s210, 8
      %s212 = scalar_lea.vmem %s4, %s211
      %p213 = pneg %p153
      %p214 = pneg %p150
      %p215 = scmp.lt.s32.totalorder %s17, 1
      %s216 = scalar_select %p215, %s17, 1
      %s217 = smul.addr %s216, 2
      %s218 = scalar_lea.vmem %s5, %s217
      %p219 = scmp.lt.s32.totalorder %s17, 1
      %s220 = scalar_select %p219, %s17, 1
      %s221 = smul.addr %s220, 8
      %s222 = scalar_lea.vmem %s0, %s221
      %p223 = scmp.lt.s32.totalorder %s17, 1
      %s224 = scalar_select %p223, %s17, 1
      %s225 = smul.addr %s224, 8
      %s226 = scalar_lea.vmem %s4, %s225
      %p227 = scmp.lt.s32.totalorder %s17, 1
      %s228 = scalar_select %p227, %s17, 1
      %s229 = smul.addr %s228, 2
      %s230 = scalar_lea.vmem %s5, %s229
      %v231 = vld [vmem:[%s222] sm:$0xff]
      %v232 = vld [vmem:[%s1] sm:$0x1]
      %v234 = vlaneseq
      %v235 = vshrl.u32 %v234, 7
      %v236 = vsub.s32 0, %v235
      %v237 = vrot.slane %v232, %v236
      %v239 = vmul.f32 %v231, %v237
      %v240 = vld [vmem:[%s2] sm:$0x1]
      %v242 = vlaneseq
      %v243 = vshrl.u32 %v242, 7
      %v244 = vsub.s32 0, %v243
      %v245 = vrot.slane %v240, %v244
      %v247 = vadd.f32 %v239, %v245
      %v248 = vmax.f32 %v247, 0.0
      %249 = vst [vmem:[#allocation2] sm:$0x1] 0.0
      %250 = vst [vmem:[#allocation2 + $0x9] sm:$0x1] 0.0
      %251 = vst [vmem:[#allocation2 + $0x1] sm:$0xff] %v248
      %v252 = vld [vmem:[#allocation2] sm:$0xff]
      %v253 = vld [vmem:[%s3] sm:$0xff]
      %v254 = vld [vmem:[%s3 + $0x8] sm:$0xff]
      %v255 = vld [vmem:[%s3 + $0x10] sm:$0xff]
      %v256 = vld [vmem:[%s3 + $0x18] sm:$0xff]
      %v257 = vld [vmem:[%s3 + $0x20] sm:$0xff]
      %v258 = vld [vmem:[%s3 + $0x28] sm:$0xff]
      %v259 = vld [vmem:[%s3 + $0x30] sm:$0xff]
      %v260 = vld [vmem:[%s3 + $0x38] sm:$0xff]
      %v261 = vld [vmem:[%s3 + $0x40] sm:$0xff]
      %v262 = vld [vmem:[%s3 + $0x48] sm:$0xff]
      %v263 = vld [vmem:[%s3 + $0x50] sm:$0xff]
      %v264 = vld [vmem:[%s3 + $0x58] sm:$0xff]
      %v265 = vld [vmem:[%s3 + $0x60] sm:$0xff]
      %v266 = vld [vmem:[%s3 + $0x68] sm:$0xff]
      %v267 = vld [vmem:[%s3 + $0x70] sm:$0xff]
      %v268 = vld [vmem:[%s3 + $0x78] sm:$0xff]
      %v269 = vld [vmem:[#allocation2 + $0x1] sm:$0xff]
      %s270 = scalar_lea.vmem %s3, 128
      %v271 = vld [vmem:[%s270] sm:$0xff]
      %v272 = vld [vmem:[%s270 + $0x8] sm:$0xff]
      %v273 = vld [vmem:[%s270 + $0x10] sm:$0xff]
      %v274 = vld [vmem:[%s270 + $0x18] sm:$0xff]
      %v275 = vld [vmem:[%s270 + $0x20] sm:$0xff]
      %v276 = vld [vmem:[%s270 + $0x28] sm:$0xff]
      %v277 = vld [vmem:[%s270 + $0x30] sm:$0xff]
      %v278 = vld [vmem:[%s270 + $0x38] sm:$0xff]
      %v279 = vld [vmem:[%s270 + $0x40] sm:$0xff]
      %v280 = vld [vmem:[%s270 + $0x48] sm:$0xff]
      %v281 = vld [vmem:[%s270 + $0x50] sm:$0xff]
      %v282 = vld [vmem:[%s270 + $0x58] sm:$0xff]
      %v283 = vld [vmem:[%s270 + $0x60] sm:$0xff]
      %v284 = vld [vmem:[%s270 + $0x68] sm:$0xff]
      %v285 = vld [vmem:[%s270 + $0x70] sm:$0xff]
      %v286 = vld [vmem:[%s270 + $0x78] sm:$0xff]
      %287 = vmatprep.subr.mxu0 0.0
      %288 = vmatpush1.msra.mxu0 %v271
      %289 = vmatprep.subr.mxu0 0.0
      %290 = vmatpush1.msra.mxu0 %v272
      %291 = vmatprep.subr.mxu0 0.0
      %292 = vmatpush1.msra.mxu0 %v273
      %293 = vmatprep.subr.mxu0 0.0
      %294 = vmatpush1.msra.mxu0 %v274
      %295 = vmatprep.subr.mxu0 0.0
      %296 = vmatpush1.msra.mxu0 %v275
      %297 = vmatprep.subr.mxu0 0.0
      %298 = vmatpush1.msra.mxu0 %v276
      %299 = vmatprep.subr.mxu0 0.0
      %300 = vmatpush1.msra.mxu0 %v277
      %301 = vmatprep.subr.mxu0 0.0
      %302 = vmatpush1.msra.mxu0 %v278
      %303 = vmatprep.subr.mxu0 0.0
      %304 = vmatpush1.msra.mxu0 %v279
      %305 = vmatprep.subr.mxu0 0.0
      %306 = vmatpush1.msra.mxu0 %v280
      %307 = vmatprep.subr.mxu0 0.0
      %308 = vmatpush1.msra.mxu0 %v281
      %309 = vmatprep.subr.mxu0 0.0
      %310 = vmatpush1.msra.mxu0 %v282
      %311 = vmatprep.subr.mxu0 0.0
      %312 = vmatpush1.msra.mxu0 %v283
      %313 = vmatprep.subr.mxu0 0.0
      %314 = vmatpush1.msra.mxu0 %v284
      %315 = vmatprep.subr.mxu0 0.0
      %316 = vmatpush1.msra.mxu0 %v285
      %317 = vmatprep.subr.mxu0 0.0
      %318 = vmatpush1.msra.mxu0 %v286
      %319 = vmatprep.subr.mxu0 0.0
      %320 = vmatpush1.msra.mxu0 0.0
      %321 = vmatprep.subr.mxu0 0.0
      %322 = vmatpush1.msra.mxu0 0.0
      %323 = vmatprep.subr.mxu0 0.0
      %324 = vmatpush1.msra.mxu0 0.0
      %325 = vmatprep.subr.mxu0 0.0
      %326 = vmatpush1.msra.mxu0 0.0
      %327 = vmatprep.subr.mxu0 0.0
      %328 = vmatpush1.msra.mxu0 0.0
      %329 = vmatprep.subr.mxu0 0.0
      %330 = vmatpush1.msra.mxu0 0.0
      %331 = vmatprep.subr.mxu0 0.0
      %332 = vmatpush1.msra.mxu0 0.0
      %333 = vmatprep.subr.mxu0 0.0
      %334 = vmatpush1.msra.mxu0 0.0
      %335 = vmatprep.subr.mxu0 0.0
      %336 = vmatpush1.msra.mxu0 0.0
      %337 = vmatprep.subr.mxu0 0.0
      %338 = vmatpush1.msra.mxu0 0.0
      %339 = vmatprep.subr.mxu0 0.0
      %340 = vmatpush1.msra.mxu0 0.0
      %341 = vmatprep.subr.mxu0 0.0
      %342 = vmatpush1.msra.mxu0 0.0
      %343 = vmatprep.subr.mxu0 0.0
      %344 = vmatpush1.msra.mxu0 0.0
      %345 = vmatprep.subr.mxu0 0.0
      %346 = vmatpush1.msra.mxu0 0.0
      %347 = vmatprep.subr.mxu0 0.0
      %348 = vmatpush1.msra.mxu0 0.0
      %349 = vmatprep.subr.mxu0 0.0
      %350 = vmatpush1.msra.mxu0 0.0
      %351 = vmatprep.mubr.f32.mxu0 0.0
      %352 = vmatmul.mubr.f32.gmra.mrb[0].mxu0 %v269
      %v353 = vpop.f32.mrb[0].mxu0
      %v354 = vadd.f32 0.0, %v353
      %v355 = vpop.f32.mrb[0].mxu0
      %356 = vdwg.mxu0
      %357 = vmatprep.subr.mxu0 0.0
      %358 = vmatpush1.msra.mxu0 %v253
      %359 = vmatprep.subr.mxu0 0.0
      %360 = vmatpush1.msra.mxu0 %v254
      %361 = vmatprep.subr.mxu0 0.0
      %362 = vmatpush1.msra.mxu0 %v255
      %363 = vmatprep.subr.mxu0 0.0
      %364 = vmatpush1.msra.mxu0 %v256
      %365 = vmatprep.subr.mxu0 0.0
      %366 = vmatpush1.msra.mxu0 %v257
      %367 = vmatprep.subr.mxu0 0.0
      %368 = vmatpush1.msra.mxu0 %v258
      %369 = vmatprep.subr.mxu0 0.0
      %370 = vmatpush1.msra.mxu0 %v259
      %371 = vmatprep.subr.mxu0 0.0
      %372 = vmatpush1.msra.mxu0 %v260
      %373 = vmatprep.subr.mxu0 0.0
      %374 = vmatpush1.msra.mxu0 %v261
      %375 = vmatprep.subr.mxu0 0.0
      %376 = vmatpush1.msra.mxu0 %v262
      %377 = vmatprep.subr.mxu0 0.0
      %378 = vmatpush1.msra.mxu0 %v263
      %379 = vmatprep.subr.mxu0 0.0
      %380 = vmatpush1.msra.mxu0 %v264
      %381 = vmatprep.subr.mxu0 0.0
      %382 = vmatpush1.msra.mxu0 %v265
      %383 = vmatprep.subr.mxu0 0.0
      %384 = vmatpush1.msra.mxu0 %v266
      %385 = vmatprep.subr.mxu0 0.0
      %386 = vmatpush1.msra.mxu0 %v267
      %387 = vmatprep.subr.mxu0 0.0
      %388 = vmatpush1.msra.mxu0 %v268
      %389 = vmatprep.subr.mxu0 0.0
      %390 = vmatpush1.msra.mxu0 0.0
      %391 = vmatprep.subr.mxu0 0.0
      %392 = vmatpush1.msra.mxu0 0.0
      %393 = vmatprep.subr.mxu0 0.0
      %394 = vmatpush1.msra.mxu0 0.0
      %395 = vmatprep.subr.mxu0 0.0
      %396 = vmatpush1.msra.mxu0 0.0
      %397 = vmatprep.subr.mxu0 0.0
      %398 = vmatpush1.msra.mxu0 0.0
      %399 = vmatprep.subr.mxu0 0.0
      %400 = vmatpush1.msra.mxu0 0.0
      %401 = vmatprep.subr.mxu0 0.0
      %402 = vmatpush1.msra.mxu0 0.0
      %403 = vmatprep.subr.mxu0 0.0
      %404 = vmatpush1.msra.mxu0 0.0
      %405 = vmatprep.subr.mxu0 0.0
      %406 = vmatpush1.msra.mxu0 0.0
      %407 = vmatprep.subr.mxu0 0.0
      %408 = vmatpush1.msra.mxu0 0.0
      %409 = vmatprep.subr.mxu0 0.0
      %410 = vmatpush1.msra.mxu0 0.0
      %411 = vmatprep.subr.mxu0 0.0
      %412 = vmatpush1.msra.mxu0 0.0
      %413 = vmatprep.subr.mxu0 0.0
      %414 = vmatpush1.msra.mxu0 0.0
      %415 = vmatprep.subr.mxu0 0.0
      %416 = vmatpush1.msra.mxu0 0.0
      %417 = vmatprep.subr.mxu0 0.0
      %418 = vmatpush1.msra.mxu0 0.0
      %419 = vmatprep.subr.mxu0 0.0
      %420 = vmatpush1.msra.mxu0 0.0
      %421 = vmatprep.mubr.f32.mxu0 0.0
      %422 = vmatmul.mubr.f32.gmra.mrb[0].mxu0 %v252
      %v423 = vpop.f32.mrb[0].mxu0
      %v424 = vadd.f32 %v354, %v423
      %v425 = vpop.f32.mrb[0].mxu0
      %426 = vdwg.mxu0
      %v427 = vld [vmem:[#allocation2 + $0x2] sm:$0xff]
      %s428 = scalar_lea.vmem %s3, 256
      %v429 = vld [vmem:[%s428] sm:$0xff]
      %v430 = vld [vmem:[%s428 + $0x8] sm:$0xff]
      %v431 = vld [vmem:[%s428 + $0x10] sm:$0xff]
      %v432 = vld [vmem:[%s428 + $0x18] sm:$0xff]
      %v433 = vld [vmem:[%s428 + $0x20] sm:$0xff]
      %v434 = vld [vmem:[%s428 + $0x28] sm:$0xff]
      %v435 = vld [vmem:[%s428 + $0x30] sm:$0xff]
      %v436 = vld [vmem:[%s428 + $0x38] sm:$0xff]
      %v437 = vld [vmem:[%s428 + $0x40] sm:$0xff]
      %v438 = vld [vmem:[%s428 + $0x48] sm:$0xff]
      %v439 = vld [vmem:[%s428 + $0x50] sm:$0xff]
      %v440 = vld [vmem:[%s428 + $0x58] sm:$0xff]
      %v441 = vld [vmem:[%s428 + $0x60] sm:$0xff]
      %v442 = vld [vmem:[%s428 + $0x68] sm:$0xff]
      %v443 = vld [vmem:[%s428 + $0x70] sm:$0xff]
      %v444 = vld [vmem:[%s428 + $0x78] sm:$0xff]
      %445 = vmatprep.subr.mxu0 0.0
      %446 = vmatpush1.msra.mxu0 %v429
      %447 = vmatprep.subr.mxu0 0.0
      %448 = vmatpush1.msra.mxu0 %v430
      %449 = vmatprep.subr.mxu0 0.0
      %450 = vmatpush1.msra.mxu0 %v431
      %451 = vmatprep.subr.mxu0 0.0
      %452 = vmatpush1.msra.mxu0 %v432
      %453 = vmatprep.subr.mxu0 0.0
      %454 = vmatpush1.msra.mxu0 %v433
      %455 = vmatprep.subr.mxu0 0.0
      %456 = vmatpush1.msra.mxu0 %v434
      %457 = vmatprep.subr.mxu0 0.0
      %458 = vmatpush1.msra.mxu0 %v435
      %459 = vmatprep.subr.mxu0 0.0
      %460 = vmatpush1.msra.mxu0 %v436
      %461 = vmatprep.subr.mxu0 0.0
      %462 = vmatpush1.msra.mxu0 %v437
      %463 = vmatprep.subr.mxu0 0.0
      %464 = vmatpush1.msra.mxu0 %v438
      %465 = vmatprep.subr.mxu0 0.0
      %466 = vmatpush1.msra.mxu0 %v439
      %467 = vmatprep.subr.mxu0 0.0
      %468 = vmatpush1.msra.mxu0 %v440
      %469 = vmatprep.subr.mxu0 0.0
      %470 = vmatpush1.msra.mxu0 %v441
      %471 = vmatprep.subr.mxu0 0.0
      %472 = vmatpush1.msra.mxu0 %v442
      %473 = vmatprep.subr.mxu0 0.0
      %474 = vmatpush1.msra.mxu0 %v443
      %475 = vmatprep.subr.mxu0 0.0
      %476 = vmatpush1.msra.mxu0 %v444
      %477 = vmatprep.subr.mxu0 0.0
      %478 = vmatpush1.msra.mxu0 0.0
      %479 = vmatprep.subr.mxu0 0.0
      %480 = vmatpush1.msra.mxu0 0.0
      %481 = vmatprep.subr.mxu0 0.0
      %482 = vmatpush1.msra.mxu0 0.0
      %483 = vmatprep.subr.mxu0 0.0
      %484 = vmatpush1.msra.mxu0 0.0
      %485 = vmatprep.subr.mxu0 0.0
      %486 = vmatpush1.msra.mxu0 0.0
      %487 = vmatprep.subr.mxu0 0.0
      %488 = vmatpush1.msra.mxu0 0.0
      %489 = vmatprep.subr.mxu0 0.0
      %490 = vmatpush1.msra.mxu0 0.0
      %491 = vmatprep.subr.mxu0 0.0
      %492 = vmatpush1.msra.mxu0 0.0
      %493 = vmatprep.subr.mxu0 0.0
      %494 = vmatpush1.msra.mxu0 0.0
      %495 = vmatprep.subr.mxu0 0.0
      %496 = vmatpush1.msra.mxu0 0.0
      %497 = vmatprep.subr.mxu0 0.0
      %498 = vmatpush1.msra.mxu0 0.0
      %499 = vmatprep.subr.mxu0 0.0
      %500 = vmatpush1.msra.mxu0 0.0
      %501 = vmatprep.subr.mxu0 0.0
      %502 = vmatpush1.msra.mxu0 0.0
      %503 = vmatprep.subr.mxu0 0.0
      %504 = vmatpush1.msra.mxu0 0.0
      %505 = vmatprep.subr.mxu0 0.0
      %506 = vmatpush1.msra.mxu0 0.0
      %507 = vmatprep.subr.mxu0 0.0
      %508 = vmatpush1.msra.mxu0 0.0
      %509 = vmatprep.mubr.f32.mxu0 0.0
      %510 = vmatmul.mubr.f32.gmra.mrb[0].mxu0 %v427
      %v511 = vpop.f32.mrb[0].mxu0
      %v512 = vadd.f32 0.0, %v511
      %v513 = vpop.f32.mrb[0].mxu0
      %514 = vdwg.mxu0
      %v515 = vadd.f32 %v424, %v512
      %516 = vst [vmem:[%s226] sm:$0xff] %v515
      %vm517 = vcmask 64512
      %v519 = vsel %vm517, 1.0, 0
      %521 = vmatprep.subr.mxu0 0.0
      %522 = vmatpush1.msra.mxu0 %v515
      %523 = vmatprep.subr.mxu0 0.0
      %524 = vmatpush1.msra.mxu0 0.0
      %525 = vmatprep.subr.mxu0 0.0
      %526 = vmatpush1.msra.mxu0 0.0
      %527 = vmatprep.subr.mxu0 0.0
      %528 = vmatpush1.msra.mxu0 0.0
      %529 = vmatprep.subr.mxu0 0.0
      %530 = vmatpush1.msra.mxu0 0.0
      %531 = vmatprep.subr.mxu0 0.0
      %532 = vmatpush1.msra.mxu0 0.0
      %533 = vmatprep.subr.mxu0 0.0
      %534 = vmatpush1.msra.mxu0 0.0
      %535 = vmatprep.subr.mxu0 0.0
      %536 = vmatpush1.msra.mxu0 0.0
      %537 = vmatprep.subr.mxu0 0.0
      %538 = vmatpush1.msra.mxu0 0.0
      %539 = vmatprep.subr.mxu0 0.0
      %540 = vmatpush1.msra.mxu0 0.0
      %541 = vmatprep.subr.mxu0 0.0
      %542 = vmatpush1.msra.mxu0 0.0
      %543 = vmatprep.subr.mxu0 0.0
      %544 = vmatpush1.msra.mxu0 0.0
      %545 = vmatprep.subr.mxu0 0.0
      %546 = vmatpush1.msra.mxu0 0.0
      %547 = vmatprep.subr.mxu0 0.0
      %548 = vmatpush1.msra.mxu0 0.0
      %549 = vmatprep.subr.mxu0 0.0
      %550 = vmatpush1.msra.mxu0 0.0
      %551 = vmatprep.subr.mxu0 0.0
      %552 = vmatpush1.msra.mxu0 0.0
      %553 = vmatprep.subr.mxu0 0.0
      %554 = vmatpush1.msra.mxu0 0.0
      %555 = vmatprep.subr.mxu0 0.0
      %556 = vmatpush1.msra.mxu0 0.0
      %557 = vmatprep.subr.mxu0 0.0
      %558 = vmatpush1.msra.mxu0 0.0
      %559 = vmatprep.subr.mxu0 0.0
      %560 = vmatpush1.msra.mxu0 0.0
      %561 = vmatprep.subr.mxu0 0.0
      %562 = vmatpush1.msra.mxu0 0.0
      %563 = vmatprep.subr.mxu0 0.0
      %564 = vmatpush1.msra.mxu0 0.0
      %565 = vmatprep.subr.mxu0 0.0
      %566 = vmatpush1.msra.mxu0 0.0
      %567 = vmatprep.subr.mxu0 0.0
      %568 = vmatpush1.msra.mxu0 0.0
      %569 = vmatprep.subr.mxu0 0.0
      %570 = vmatpush1.msra.mxu0 0.0
      %571 = vmatprep.subr.mxu0 0.0
      %572 = vmatpush1.msra.mxu0 0.0
      %573 = vmatprep.subr.mxu0 0.0
      %574 = vmatpush1.msra.mxu0 0.0
      %575 = vmatprep.subr.mxu0 0.0
      %576 = vmatpush1.msra.mxu0 0.0
      %577 = vmatprep.subr.mxu0 0.0
      %578 = vmatpush1.msra.mxu0 0.0
      %579 = vmatprep.subr.mxu0 0.0
      %580 = vmatpush1.msra.mxu0 0.0
      %581 = vmatprep.subr.mxu0 0.0
      %582 = vmatpush1.msra.mxu0 0.0
      %583 = vmatprep.subr.mxu0 0.0
      %584 = vmatpush1.msra.mxu0 0.0
      %585 = vmatprep.mubr.f32.mxu0 0.0
      %586 = vmatmul.mubr.f32.gmra.mrb[0].mxu0 %v519
      %v587 = vpop.f32.mrb[0].mxu0
      %v588 = vadd.f32 0.0, %v587
      %v589 = vpop.f32.mrb[0].mxu0
      %590 = vdwg.mxu0
      %v591 = vmul.f32 %v515, %v515
      %592 = vmatprep.subr.mxu0 0.0
      %593 = vmatpush1.msra.mxu0 %v591
      %594 = vmatprep.subr.mxu0 0.0
      %595 = vmatpush1.msra.mxu0 0.0
      %596 = vmatprep.subr.mxu0 0.0
      %597 = vmatpush1.msra.mxu0 0.0
      %598 = vmatprep.subr.mxu0 0.0
      %599 = vmatpush1.msra.mxu0 0.0
      %600 = vmatprep.subr.mxu0 0.0
      %601 = vmatpush1.msra.mxu0 0.0
      %602 = vmatprep.subr.mxu0 0.0
      %603 = vmatpush1.msra.mxu0 0.0
      %604 = vmatprep.subr.mxu0 0.0
      %605 = vmatpush1.msra.mxu0 0.0
      %606 = vmatprep.subr.mxu0 0.0
      %607 = vmatpush1.msra.mxu0 0.0
      %608 = vmatprep.subr.mxu0 0.0
      %609 = vmatpush1.msra.mxu0 0.0
      %610 = vmatprep.subr.mxu0 0.0
      %611 = vmatpush1.msra.mxu0 0.0
      %612 = vmatprep.subr.mxu0 0.0
      %613 = vmatpush1.msra.mxu0 0.0
      %614 = vmatprep.subr.mxu0 0.0
      %615 = vmatpush1.msra.mxu0 0.0
      %616 = vmatprep.subr.mxu0 0.0
      %617 = vmatpush1.msra.mxu0 0.0
      %618 = vmatprep.subr.mxu0 0.0
      %619 = vmatpush1.msra.mxu0 0.0
      %620 = vmatprep.subr.mxu0 0.0
      %621 = vmatpush1.msra.mxu0 0.0
      %622 = vmatprep.subr.mxu0 0.0
      %623 = vmatpush1.msra.mxu0 0.0
      %624 = vmatprep.subr.mxu0 0.0
      %625 = vmatpush1.msra.mxu0 0.0
      %626 = vmatprep.subr.mxu0 0.0
      %627 = vmatpush1.msra.mxu0 0.0
      %628 = vmatprep.subr.mxu0 0.0
      %629 = vmatpush1.msra.mxu0 0.0
      %630 = vmatprep.subr.mxu0 0.0
      %631 = vmatpush1.msra.mxu0 0.0
      %632 = vmatprep.subr.mxu0 0.0
      %633 = vmatpush1.msra.mxu0 0.0
      %634 = vmatprep.subr.mxu0 0.0
      %635 = vmatpush1.msra.mxu0 0.0
      %636 = vmatprep.subr.mxu0 0.0
      %637 = vmatpush1.msra.mxu0 0.0
      %638 = vmatprep.subr.mxu0 0.0
      %639 = vmatpush1.msra.mxu0 0.0
      %640 = vmatprep.subr.mxu0 0.0
      %641 = vmatpush1.msra.mxu0 0.0
      %642 = vmatprep.subr.mxu0 0.0
      %643 = vmatpush1.msra.mxu0 0.0
      %644 = vmatprep.subr.mxu0 0.0
      %645 = vmatpush1.msra.mxu0 0.0
      %646 = vmatprep.subr.mxu0 0.0
      %647 = vmatpush1.msra.mxu0 0.0
      %648 = vmatprep.subr.mxu0 0.0
      %649 = vmatpush1.msra.mxu0 0.0
      %650 = vmatprep.subr.mxu0 0.0
      %651 = vmatpush1.msra.mxu0 0.0
      %652 = vmatprep.subr.mxu0 0.0
      %653 = vmatpush1.msra.mxu0 0.0
      %654 = vmatprep.subr.mxu0 0.0
      %655 = vmatpush1.msra.mxu0 0.0
      %656 = vmatprep.mubr.f32.mxu0 0.0
      %657 = vmatmul.mubr.f32.gmra.mrb[0].mxu0 %v519
      %v658 = vpop.f32.mrb[0].mxu0
      %v659 = vadd.f32 0.0, %v658
      %v660 = vpop.f32.mrb[0].mxu0
      %661 = vdwg.mxu0
      %v663 = vrot.slane %v659, 7
      %vm665 = vcmask 1040384
      %v666 = vsel %vm665, %v588, %v663
      %667 = vst [vmem:[%s230] sm:$0x3] %v666
      %p668 = scmp.lt.s32.totalorder %s17, 1
      %s669 = scalar_select %p668, %s17, 1
      %s670 = smul.addr %s669, 8
      %s671 = scalar_lea.vmem %s4, %s670
      %p672 = scmp.lt.s32.totalorder %s17, 1
      %s673 = scalar_select %p672, %s17, 1
      %s674 = smul.addr %s673, 2
      %s675 = scalar_lea.vmem %s5, %s674
      // Predicated region
      $region37: #{basicblock_forward.4} parent=35 // pred_check
        %p676 = pneg %p124
      $region38: #{basicblock_forward.4} parent=35 // pred_check_branch
        %678 = sbr.rel (%p676) target = $region40
      $region39: #{basicblock_forward.4} parent=35 // pred_region
        _
      $region40: #{basicblock_forward.4} parent=35 // pred_fallthru
        _
      // Predicated region
      $region41: #{basicblock_forward.4} parent=35 // pred_check
        %p679 = pneg %p150
      $region42: #{basicblock_forward.4} parent=35 // pred_check_branch
        %681 = sbr.rel (%p679) target = $region44
      $region43: #{basicblock_forward.4} parent=35 // pred_region
        _
      $region44: #{basicblock_forward.4} parent=35 // pred_fallthru
        _
    $region36: #{basicblock_forward.4} parent=5 // pred_fallthru
      _
    %p682 = scmp.le.s32.totalorder 2, %s12
    // Predicated region
    $region45: #{basicblock_forward.4} parent=5 // pred_check
      %p683 = pneg %p682
    $region46: #{basicblock_forward.4} parent=5 // pred_check_branch
      %685 = sbr.rel (%p683) target = $region48
    $region47: #{basicblock_forward.4} parent=5 // pred_region
      %s686 = ssub.s32 %s12, 2
      // Predicated region
      $region49: #{basicblock_forward.4} parent=47 // pred_check
        %p687 = pneg %p130
      $region50: #{basicblock_forward.4} parent=47 // pred_check_branch
        %689 = sbr.rel (%p687) target = $region52
      $region51: #{basicblock_forward.4} parent=47 // pred_region
        %p690 = scmp.lt.s32.totalorder %s18, 1
        %s691 = scalar_select %p690, %s18, 1
        %s692 = smul.addr %s691, 8
        %s693 = scalar_lea.vmem %s4, %s692
      $region52: #{basicblock_forward.4} parent=47 // pred_fallthru
        _
      // Predicated region
      $region53: #{basicblock_forward.4} parent=47 // pred_check
        %p694 = pneg %p156
      $region54: #{basicblock_forward.4} parent=47 // pred_check_branch
        %696 = sbr.rel (%p694) target = $region56
      $region55: #{basicblock_forward.4} parent=47 // pred_region
        %p697 = scmp.lt.s32.totalorder %s18, 1
        %s698 = scalar_select %p697, %s18, 1
        %s699 = smul.addr %s698, 2
        %s700 = scalar_lea.vmem %s5, %s699
      $region56: #{basicblock_forward.4} parent=47 // pred_fallthru
        _
    $region48: #{basicblock_forward.4} parent=5 // pred_fallthru
      _
  $region6: #{basicblock_forward.4} parent=0 // loop_footer
    %s16 = sadd.s32 1, %s12
  $region7: #{basicblock_forward.4} parent=0 // loop_footer_branch
    %11 = sbr.rel target = $region3
  $region8: #{basicblock_forward.4} parent=0 // loop_exit
    _

// kernel: basicblock_forward.5
$region0: #{basicblock_forward.5}
  #allocation0 [shape = 'u32[]', space=smem, size = 0x4, offset = 0x4, fixed_abs, tag = 'smem constant byte address 0x4 - core index']
  #allocation1 [shape = 'u32[144,128]{1,0:T(1,128)}', space=vmem, size = 0x12000, scoped, tag = 'internal scratch']
  %s0 = inlined_call_operand.vmem [shape: f32[16,128], index: 0, kind: input, shape index: {}]
  %s1 = inlined_call_operand.vmem [shape: f32[16,128], index: 1, kind: input, shape index: {}]
  %s2 = inlined_call_operand.vmem [shape: f32[1,128], index: 2, kind: input, shape index: {}]
  %s3 = inlined_call_operand.vmem [shape: f32[1,128], index: 3, kind: input, shape index: {}]
  %s4 = inlined_call_operand.vmem [shape: f32[16,128], index: 4, kind: output, shape index: {}]
  %s5 = sld [smem:[#allocation0]]
  $region49: #{basicblock_forward.5} parent=0
    _
  %s7 = ssub.s32 1, %s5
  %s8 = scalar_select 0, %s7, %s5
  loop: start=0, step=1, limit=4
  $region2: #{basicblock_forward.5} parent=0 // loop_pre_header
    _
  $region3: #{basicblock_forward.5} parent=0 // loop_header
    %s10 = sphi 0, %s14
    %p11 = scmp.ge.s32.totalorder %s10, 4
    %s20 = sphi 0, %s22
    %s23 = sphi 0, %s20
    %s24 = sphi 0, %s23
    %s40 = sphi 0, %s24
    %s46 = sphi 0, %s48
    %s49 = sphi 0, %s46
    %s50 = sphi 0, %s49
    %s66 = sphi 0, %s50
    %s70 = sphi 0, %s70
    %s72 = sphi 0, %s70
    %s73 = sphi 0, %s72
    %s87 = sphi 0, %s73
    %s91 = sphi 0, %s91
    %s93 = sphi 0, %s91
    %s94 = sphi 0, %s93
    %s108 = sphi 0, %s94
    %s114 = sphi 0, %s116
    %s117 = sphi 0, %s114
    %s118 = sphi 0, %s117
    %s134 = sphi 0, %s118
  $region4: #{basicblock_forward.5} parent=0 // loop_header_branch
    %13 = sbr.rel (%p11) target = $region8
  $region5: #{basicblock_forward.5} parent=0 // loop_body
    %s15 = ssub.s32 %s10, 1
    %s16 = ssub.s32 %s10, 2
    %s17 = sadd.s32 %s10, 1
    %s18 = ssub.s32 %s10, %s17
    %p19 = scmp.eq.s32.totalorder %s18, 0
    %s21 = sadd.s32 %s20, 1
    %s22 = scalar_select %p19, %s20, %s21
    %p25 = pneg %p19
    %p26 = scmp.eq.s32.totalorder %s10, 1
    %p27 = por %p25, %p26
    %p28 = scmp.ne.s32.totalorder %s20, %s23
    %p29 = scmp.eq.s32.totalorder %s10, 0
    %p30 = por %p28, %p29
    %p31 = scmp.ne.s32.totalorder %s20, %s23
    %p32 = scmp.eq.s32.totalorder %s15, 1
    %p33 = por %p31, %p32
    %p34 = scmp.ne.s32.totalorder %s23, %s24
    %p35 = scmp.eq.s32.totalorder %s15, 0
    %p36 = por %p34, %p35
    %p37 = scmp.ne.s32.totalorder %s23, %s24
    %p38 = scmp.eq.s32.totalorder %s16, 1
    %p39 = por %p37, %p38
    %p41 = scmp.ne.s32.totalorder %s24, %s40
    %p42 = scmp.eq.s32.totalorder %s16, 0
    %p43 = por %p41, %p42
    %s44 = ssub.s32 %s10, %s17
    %p45 = scmp.eq.s32.totalorder %s44, 0
    %s47 = sadd.s32 %s46, 1
    %s48 = scalar_select %p45, %s46, %s47
    %p51 = pneg %p45
    %p52 = scmp.eq.s32.totalorder %s10, 1
    %p53 = por %p51, %p52
    %p54 = scmp.ne.s32.totalorder %s46, %s49
    %p55 = scmp.eq.s32.totalorder %s10, 0
    %p56 = por %p54, %p55
    %p57 = scmp.ne.s32.totalorder %s46, %s49
    %p58 = scmp.eq.s32.totalorder %s15, 1
    %p59 = por %p57, %p58
    %p60 = scmp.ne.s32.totalorder %s49, %s50
    %p61 = scmp.eq.s32.totalorder %s15, 0
    %p62 = por %p60, %p61
    %p63 = scmp.ne.s32.totalorder %s49, %s50
    %p64 = scmp.eq.s32.totalorder %s16, 1
    %p65 = por %p63, %p64
    %p67 = scmp.ne.s32.totalorder %s50, %s66
    %p68 = scmp.eq.s32.totalorder %s16, 0
    %p69 = por %p67, %p68
    %s71 = sadd.s32 %s70, 1
    %p74 = scmp.eq.s32.totalorder %s10, 1
    %p75 = scmp.ne.s32.totalorder %s70, %s72
    %p76 = scmp.eq.s32.totalorder %s10, 0
    %p77 = por %p75, %p76
    %p78 = scmp.ne.s32.totalorder %s70, %s72
    %p79 = scmp.eq.s32.totalorder %s15, 1
    %p80 = por %p78, %p79
    %p81 = scmp.ne.s32.totalorder %s72, %s73
    %p82 = scmp.eq.s32.totalorder %s15, 0
    %p83 = por %p81, %p82
    %p84 = scmp.ne.s32.totalorder %s72, %s73
    %p85 = scmp.eq.s32.totalorder %s16, 1
    %p86 = por %p84, %p85
    %p88 = scmp.ne.s32.totalorder %s73, %s87
    %p89 = scmp.eq.s32.totalorder %s16, 0
    %p90 = por %p88, %p89
    %s92 = sadd.s32 %s91, 1
    %p95 = scmp.eq.s32.totalorder %s10, 1
    %p96 = scmp.ne.s32.totalorder %s91, %s93
    %p97 = scmp.eq.s32.totalorder %s10, 0
    %p98 = por %p96, %p97
    %p99 = scmp.ne.s32.totalorder %s91, %s93
    %p100 = scmp.eq.s32.totalorder %s15, 1
    %p101 = por %p99, %p100
    %p102 = scmp.ne.s32.totalorder %s93, %s94
    %p103 = scmp.eq.s32.totalorder %s15, 0
    %p104 = por %p102, %p103
    %p105 = scmp.ne.s32.totalorder %s93, %s94
    %p106 = scmp.eq.s32.totalorder %s16, 1
    %p107 = por %p105, %p106
    %p109 = scmp.ne.s32.totalorder %s94, %s108
    %p110 = scmp.eq.s32.totalorder %s16, 0
    %p111 = por %p109, %p110
    %s112 = ssub.s32 %s10, %s17
    %p113 = scmp.eq.s32.totalorder %s112, 0
    %s115 = sadd.s32 %s114, 1
    %s116 = scalar_select %p113, %s114, %s115
    %p119 = pneg %p113
    %p120 = scmp.eq.s32.totalorder %s10, 1
    %p121 = por %p119, %p120
    %p122 = scmp.ne.s32.totalorder %s114, %s117
    %p123 = scmp.eq.s32.totalorder %s10, 0
    %p124 = por %p122, %p123
    %p125 = scmp.ne.s32.totalorder %s114, %s117
    %p126 = scmp.eq.s32.totalorder %s15, 1
    %p127 = por %p125, %p126
    %p128 = scmp.ne.s32.totalorder %s117, %s118
    %p129 = scmp.eq.s32.totalorder %s15, 0
    %p130 = por %p128, %p129
    %p131 = scmp.ne.s32.totalorder %s117, %s118
    %p132 = scmp.eq.s32.totalorder %s16, 1
    %p133 = por %p131, %p132
    %p135 = scmp.ne.s32.totalorder %s118, %s134
    %p136 = scmp.eq.s32.totalorder %s16, 0
    %p137 = por %p135, %p136
    %p138 = scmp.le.s32.totalorder 1, %s10
    %p139 = scmp.lt.s32.totalorder %s10, 3
    %p140 = pnand %p138, %p139
    %p141 = pneg %p140
    // Predicated region
    $region9: #{basicblock_forward.5} parent=5 // pred_check
      _
    $region10: #{basicblock_forward.5} parent=5 // pred_check_branch
      %143 = sbr.rel (%p140) target = $region12
    $region11: #{basicblock_forward.5} parent=5 // pred_region
      %s144 = ssub.s32 %s10, 1
      // Predicated region
      $region13: #{basicblock_forward.5} parent=11 // pred_check
        %p145 = pneg %p83
      $region14: #{basicblock_forward.5} parent=11 // pred_check_branch
        %147 = sbr.rel (%p145) target = $region16
      $region15: #{basicblock_forward.5} parent=11 // pred_region
        _
      $region16: #{basicblock_forward.5} parent=11 // pred_fallthru
        _
      // Predicated region
      $region17: #{basicblock_forward.5} parent=11 // pred_check
        %p148 = pneg %p104
      $region18: #{basicblock_forward.5} parent=11 // pred_check_branch
        %150 = sbr.rel (%p148) target = $region20
      $region19: #{basicblock_forward.5} parent=11 // pred_region
        _
      $region20: #{basicblock_forward.5} parent=11 // pred_fallthru
        _
    $region12: #{basicblock_forward.5} parent=5 // pred_fallthru
      _
    %p151 = scmp.lt.s32.totalorder %s10, 2
    // Predicated region
    $region21: #{basicblock_forward.5} parent=5 // pred_check
      %p152 = pneg %p151
    $region22: #{basicblock_forward.5} parent=5 // pred_check_branch
      %154 = sbr.rel (%p152) target = $region24
    $region23: #{basicblock_forward.5} parent=5 // pred_region
      // Predicated region
      $region25: #{basicblock_forward.5} parent=23 // pred_check
        %p155 = pneg %p30
      $region26: #{basicblock_forward.5} parent=23 // pred_check_branch
        %157 = sbr.rel (%p155) target = $region28
      $region27: #{basicblock_forward.5} parent=23 // pred_region
        %p158 = scmp.lt.s32.totalorder %s10, 1
        %s159 = scalar_select %p158, %s10, 1
        %s160 = smul.addr %s159, 8
        %s161 = scalar_lea.vmem %s0, %s160
      $region28: #{basicblock_forward.5} parent=23 // pred_fallthru
        _
      // Predicated region
      $region29: #{basicblock_forward.5} parent=23 // pred_check
        %p162 = pneg %p56
      $region30: #{basicblock_forward.5} parent=23 // pred_check_branch
        %164 = sbr.rel (%p162) target = $region32
      $region31: #{basicblock_forward.5} parent=23 // pred_region
        %p165 = scmp.lt.s32.totalorder %s10, 1
        %s166 = scalar_select %p165, %s10, 1
        %s167 = smul.addr %s166, 8
        %s168 = scalar_lea.vmem %s1, %s167
      $region32: #{basicblock_forward.5} parent=23 // pred_fallthru
        _
    $region24: #{basicblock_forward.5} parent=5 // pred_fallthru
      _
    %p169 = scmp.le.s32.totalorder 1, %s10
    %p170 = scmp.lt.s32.totalorder %s10, 3
    %p171 = pnand %p169, %p170
    %p172 = pneg %p171
    // Predicated region
    $region33: #{basicblock_forward.5} parent=5 // pred_check
      _
    $region34: #{basicblock_forward.5} parent=5 // pred_check_branch
      %174 = sbr.rel (%p171) target = $region36
    $region35: #{basicblock_forward.5} parent=5 // pred_region
      %s175 = ssub.s32 %s10, 1
      %p176 = scmp.lt.s32.totalorder %s15, 1
      %s177 = scalar_select %p176, %s15, 1
      %s178 = smul.addr %s177, 8
      %s179 = scalar_lea.vmem %s0, %s178
      %p180 = pneg %p36
      %p181 = pneg %p33
      %p182 = scmp.lt.s32.totalorder %s15, 1
      %s183 = scalar_select %p182, %s15, 1
      %s184 = smul.addr %s183, 8
      %s185 = scalar_lea.vmem %s1, %s184
      %p186 = pneg %p62
      %p187 = pneg %p59
      %p188 = pneg %p83
      %p189 = pneg %p80
      %p190 = pneg %p104
      %p191 = pneg %p101
      %p192 = pneg %p130
      %p193 = pneg %p127
      %p194 = scmp.lt.s32.totalorder %s15, 1
      %s195 = scalar_select %p194, %s15, 1
      %s196 = smul.addr %s195, 8
      %s197 = scalar_lea.vmem %s4, %s196
      %p198 = scmp.lt.s32.totalorder %s15, 1
      %s199 = scalar_select %p198, %s15, 1
      %s200 = smul.addr %s199, 8
      %s201 = scalar_lea.vmem %s0, %s200
      %p202 = scmp.lt.s32.totalorder %s15, 1
      %s203 = scalar_select %p202, %s15, 1
      %s204 = smul.addr %s203, 8
      %s205 = scalar_lea.vmem %s1, %s204
      %p206 = scmp.lt.s32.totalorder %s15, 1
      %s207 = scalar_select %p206, %s15, 1
      %s208 = smul.addr %s207, 8
      %s209 = scalar_lea.vmem %s4, %s208
      %v210 = vld [vmem:[%s201] sm:$0xff]
      %v211 = vld [vmem:[%s2] sm:$0x1]
      %v213 = vlaneseq
      %v214 = vshrl.u32 %v213, 7
      %v215 = vsub.s32 0, %v214
      %v216 = vrot.slane %v211, %v215
      %v218 = vmul.f32 %v210, %v216
      %v219 = vld [vmem:[%s3] sm:$0x1]
      %v221 = vlaneseq
      %v222 = vshrl.u32 %v221, 7
      %v223 = vsub.s32 0, %v222
      %v224 = vrot.slane %v219, %v223
      %v226 = vadd.f32 %v218, %v224
      %v227 = vld [vmem:[%s205] sm:$0xff]
      %v228 = vadd.f32 %v226, %v227
      %v229 = vmax.f32 %v228, 0.0
      %230 = vst [vmem:[%s209] sm:$0xff] %v229
      %p231 = scmp.lt.s32.totalorder %s15, 1
      %s232 = scalar_select %p231, %s15, 1
      %s233 = smul.addr %s232, 8
      %s234 = scalar_lea.vmem %s4, %s233
      // Predicated region
      $region37: #{basicblock_forward.5} parent=35 // pred_check
        %p235 = pneg %p127
      $region38: #{basicblock_forward.5} parent=35 // pred_check_branch
        %237 = sbr.rel (%p235) target = $region40
      $region39: #{basicblock_forward.5} parent=35 // pred_region
        _
      $region40: #{basicblock_forward.5} parent=35 // pred_fallthru
        _
    $region36: #{basicblock_forward.5} parent=5 // pred_fallthru
      _
    %p238 = scmp.le.s32.totalorder 2, %s10
    // Predicated region
    $region41: #{basicblock_forward.5} parent=5 // pred_check
      %p239 = pneg %p238
    $region42: #{basicblock_forward.5} parent=5 // pred_check_branch
      %241 = sbr.rel (%p239) target = $region44
    $region43: #{basicblock_forward.5} parent=5 // pred_region
      %s242 = ssub.s32 %s10, 2
      // Predicated region
      $region45: #{basicblock_forward.5} parent=43 // pred_check
        %p243 = pneg %p133
      $region46: #{basicblock_forward.5} parent=43 // pred_check_branch
        %245 = sbr.rel (%p243) target = $region48
      $region47: #{basicblock_forward.5} parent=43 // pred_region
        %p246 = scmp.lt.s32.totalorder %s16, 1
        %s247 = scalar_select %p246, %s16, 1
        %s248 = smul.addr %s247, 8
        %s249 = scalar_lea.vmem %s4, %s248
      $region48: #{basicblock_forward.5} parent=43 // pred_fallthru
        _
    $region44: #{basicblock_forward.5} parent=5 // pred_fallthru
      _
  $region6: #{basicblock_forward.5} parent=0 // loop_footer
    %s14 = sadd.s32 1, %s10
  $region7: #{basicblock_forward.5} parent=0 // loop_footer_branch
    %9 = sbr.rel target = $region3
  $region8: #{basicblock_forward.5} parent=0 // loop_exit
    _

</llo_original>
